<compile_context>
chip_gen: v5e
topology: v5e:2x2
jax: 0.10.0
libtpu: 0.0.40
codegen_flags: <defaults>
</compile_context>

<pallas_src>
import jax
import jax.numpy as jnp
from jax.experimental import pallas as pl
from jax.experimental.pallas import tpu as pltpu


def _round_up(x, m):
    return (x + m - 1) // m * m


# ------------------------- fused BiLSTM + max-pool + FC kernel -------------------------

def make_bilstm_kernel(Tc, T_pad, H):
    def kernel(gf_ref,      # (Tc, B, 4H) forward pre-activations  x@W_ih_f + b_f (chunk t)
               gb_ref,      # (Tc, B, 4H) backward pre-activations (chunk T-1-t, reversed)
               len_ref,     # (B, 1) int32 sequence lengths
               maxlen_ref,  # (1,)  int32 max(lengths), in SMEM
               whh_f_ref,   # (H, 4H)
               whh_b_ref,   # (H, 4H)
               fcw_f_ref,   # (H, L)  = fc_w[:H]
               fcw_b_ref,   # (H, L)  = fc_w[H:]
               fcb_ref,     # (1, L)
               out_ref,     # (B, L)
               h_f, c_f, h_b, c_b, m_f, m_b):  # VMEM scratch, (B, H) f32 each
        t = pl.program_id(0)
        nt = pl.num_programs(0)

        @pl.when(t == 0)
        def _init():
            zero = jnp.zeros(h_f.shape, h_f.dtype)
            h_f[...] = zero
            c_f[...] = zero
            h_b[...] = zero
            c_b[...] = zero
            neg = jnp.full(m_f.shape, -jnp.inf, m_f.dtype)
            m_f[...] = neg
            m_b[...] = neg

        lens = len_ref[...]          # (B, 1) int32
        maxlen = maxlen_ref[0]       # scalar int32

        def cell(g_pre, whh_ref, h_ref, c_ref, m_ref, t_real):
            # Only the H-side matmul is on the recurrent critical path.
            gates = g_pre + jnp.dot(h_ref[...], whh_ref[...],
                                    preferred_element_type=jnp.float32)   # (B, 4H)
            i_g = jax.nn.sigmoid(gates[:, 0:H])
            f_g = jax.nn.sigmoid(gates[:, H:2 * H])
            g_g = jnp.tanh(gates[:, 2 * H:3 * H])
            o_g = jax.nn.sigmoid(gates[:, 3 * H:4 * H])
            c_new = f_g * c_ref[...] + i_g * g_g
            h_new = o_g * jnp.tanh(c_new)

            valid = t_real < lens                                         # (B, 1) bool
            h_ref[...] = jnp.where(valid, h_new, h_ref[...])
            c_ref[...] = jnp.where(valid, c_new, c_ref[...])
            # pad_packed_sequence pads with 0 only up to max(lengths); positions beyond
            # max(lengths) are excluded from the pool entirely (-inf).
            pad_val = jnp.where(t_real < maxlen, 0.0, -jnp.inf)
            m_ref[...] = jnp.maximum(m_ref[...], jnp.where(valid, h_new, pad_val))

        # Statically unrolled inner loop over the time chunk.
        for tc in range(Tc):
            t_fwd = t * Tc + tc                        # forward real time
            cell(gf_ref[tc], whh_f_ref, h_f, c_f, m_f, t_fwd)
            t_bwd = (T_pad - 1) - (t * Tc + tc)        # backward real time (descending)
            cell(gb_ref[Tc - 1 - tc], whh_b_ref, h_b, c_b, m_b, t_bwd)

        @pl.when(t == nt - 1)
        def _finalize():
            logits = (jnp.dot(m_f[...], fcw_f_ref[...], preferred_element_type=jnp.float32)
                      + jnp.dot(m_b[...], fcw_b_ref[...], preferred_element_type=jnp.float32)
                      + fcb_ref[...])
            out_ref[...] = logits.astype(out_ref.dtype)

    return kernel


def bilstm_pool_fc(x_tbe, lengths, params, time_chunk=4):
    """x_tbe: (T, B, E) time-major f32; lengths: (B,) int32. Returns (B, num_labels)."""
    T, B, E = x_tbe.shape
    H = params["w_hh_f"].shape[0]
    L = params["fc_w"].shape[1]
    hp = jax.lax.Precision.HIGHEST

    # Hoisted input projections: one fat MXU-friendly matmul per direction (off the
    # recurrent critical path).
    gf = jnp.einsum("tbe,eg->tbg", x_tbe, params["w_ih_f"], precision=hp) + params["b_f"]
    gb = jnp.einsum("tbe,eg->tbg", x_tbe, params["w_ih_b"], precision=hp) + params["b_b"]

    Tc = min(time_chunk, T)
    T_pad = _round_up(T, Tc)
    B_pad = _round_up(B, 8)                 # sublane alignment
    gf = jnp.pad(gf, ((0, T_pad - T), (0, B_pad - B), (0, 0)))
    gb = jnp.pad(gb, ((0, T_pad - T), (0, B_pad - B), (0, 0)))
    len_col = jnp.pad(lengths.astype(jnp.int32), (0, B_pad - B)).reshape(B_pad, 1)
    maxlen = jnp.max(lengths).astype(jnp.int32).reshape(1)

    fcw_f = params["fc_w"][:H]
    fcw_b = params["fc_w"][H:]
    fcb = params["fc_b"].reshape(1, L)

    num_chunks = T_pad // Tc
    kernel = make_bilstm_kernel(Tc, T_pad, H)

    out = pl.pallas_call(
        kernel,
        out_shape=jax.ShapeDtypeStruct((B_pad, L), jnp.float32),
        grid_spec=pltpu.PrefetchScalarGridSpec(
            num_scalar_prefetch=0,
            grid=(num_chunks,),
            in_specs=[
                pl.BlockSpec((Tc, B_pad, 4 * H), lambda t: (t, 0, 0)),                   # gf
                pl.BlockSpec((Tc, B_pad, 4 * H), lambda t: (num_chunks - 1 - t, 0, 0)),  # gb (reversed)
                pl.BlockSpec((B_pad, 1), lambda t: (0, 0)),                              # lengths
                pl.BlockSpec(memory_space=pltpu.MemorySpace.SMEM),                       # maxlen
                pl.BlockSpec((H, 4 * H), lambda t: (0, 0)),                              # W_hh_f
                pl.BlockSpec((H, 4 * H), lambda t: (0, 0)),                              # W_hh_b
                pl.BlockSpec((H, L), lambda t: (0, 0)),                                  # fc_w[:H]
                pl.BlockSpec((H, L), lambda t: (0, 0)),                                  # fc_w[H:]
                pl.BlockSpec((1, L), lambda t: (0, 0)),                                  # fc_b
            ],
            out_specs=pl.BlockSpec((B_pad, L), lambda t: (0, 0)),
            scratch_shapes=[pltpu.VMEM((B_pad, H), jnp.float32) for _ in range(6)],
        ),
        compiler_params=pltpu.CompilerParams(dimension_semantics=("arbitrary",)),
    )(gf, gb, len_col, maxlen,
      params["w_hh_f"], params["w_hh_b"], fcw_f, fcw_b, fcb)

    return out[:B]


# ------------------------------------ model glue ------------------------------------

def lstm_model_forward(params, src, sentence_lengths):
    lengths = sentence_lengths.astype(jnp.int32)
    emb = params["embedding"][src]                            # (B, T, E) embedding gather (XLA)
    x = jnp.transpose(emb, (1, 0, 2)).astype(jnp.float32)     # (T, B, E) time-major
    return bilstm_pool_fc(x, lengths, params)                 # (B, num_labels)


# --------------------------- params & pure-JAX reference ----------------------------

def init_params(key, vocab_size, E, H, num_labels):
    ks = jax.random.split(key, 9)
    s = 1.0 / jnp.sqrt(jnp.float32(H))

    def u(k, shape):
        return jax.random.uniform(k, shape, jnp.float32, -s, s)

    return {
        "embedding": jax.random.normal(ks[0], (vocab_size, E), jnp.float32),
        "w_ih_f": u(ks[1], (E, 4 * H)),
        "w_hh_f": u(ks[2], (H, 4 * H)),
        "b_f": u(ks[3], (4 * H,)),
        "w_ih_b": u(ks[4], (E, 4 * H)),
        "w_hh_b": u(ks[5], (H, 4 * H)),
        "b_b": u(ks[6], (4 * H,)),
        "fc_w": u(ks[7], (2 * H, num_labels)),
        "fc_b": u(ks[8], (num_labels,)),
    }


def reverse_by_length(x_tbc, lengths):
    """out[t, b] = x[lengths[b]-1-t, b] for t < lengths[b], else 0.  x: (T, B, C)."""
    T = x_tbc.shape[0]
    t_idx = jnp.arange(T)[:, None]
    rev_idx = jnp.clip(lengths[None, :] - 1 - t_idx, 0, T - 1)
    out = jnp.take_along_axis(x_tbc, rev_idx[..., None], axis=0)
    mask = (t_idx < lengths[None, :])[..., None]
    return jnp.where(mask, out, 0.0)


def reference_forward(params, src, sentence_lengths):
    lengths = sentence_lengths.astype(jnp.int32)
    x = jnp.transpose(params["embedding"][src], (1, 0, 2)).astype(jnp.float32)
    T, B, _ = x.shape
    H = params["w_hh_f"].shape[0]
    hp = jax.lax.Precision.HIGHEST

    def run_dir(xs, w_ih, w_hh, b):
        def step(carry, inp):
            h, c = carry
            x_t, t = inp
            gates = (jnp.dot(x_t, w_ih, precision=hp)
                     + jnp.dot(h, w_hh, precision=hp) + b)
            i = jax.nn.sigmoid(gates[:, :H])
            f = jax.nn.sigmoid(gates[:, H:2 * H])
            g = jnp.tanh(gates[:, 2 * H:3 * H])
            o = jax.nn.sigmoid(gates[:, 3 * H:])
            c_new = f * c + i * g
            h_new = o * jnp.tanh(c_new)
            valid = (t < lengths)[:, None]
            return ((jnp.where(valid, h_new, h), jnp.where(valid, c_new, c)),
                    jnp.where(valid, h_new, 0.0))

        init = (jnp.zeros((B, H), jnp.float32), jnp.zeros((B, H), jnp.float32))
        _, outs = jax.lax.scan(step, init, (xs, jnp.arange(T)))
        return outs

    h_f = run_dir(x, params["w_ih_f"], params["w_hh_f"], params["b_f"])
    h_b = reverse_by_length(
        run_dir(reverse_by_length(x, lengths),
                params["w_ih_b"], params["w_hh_b"], params["b_b"]), lengths)
    y = jnp.concatenate([h_f, h_b], axis=-1)
    t_idx = jnp.arange(T)[:, None, None]
    y = jnp.where(t_idx < jnp.max(lengths), y, -jnp.inf)
    pooled = jnp.max(y, axis=0)
    return jnp.dot(pooled, params["fc_w"], precision=hp) + params["fc_b"]


# ---------------------------------------- main ----------------------------------------

if __name__ == "__main__":
    B, T = 4, 8
    vocab_size, E, H, num_labels = 100, 16, 32, 5

    key = jax.random.PRNGKey(0)
    k_param, k_src = jax.random.split(key)
    params = init_params(k_param, vocab_size, E, H, num_labels)

    src = jax.random.randint(k_src, (B, T), 0, vocab_size, dtype=jnp.int32)
    sentence_lengths = jnp.array([8, 5, 8, 3], dtype=jnp.int32)

    out = jax.jit(lstm_model_forward)(params, src, sentence_lengths)
    out = jax.block_until_ready(out)
    assert out.shape == (B, num_labels), out.shape

    ref = jax.block_until_ready(reference_forward(params, src, sentence_lengths))
    assert jnp.allclose(out, ref, atol=2e-2, rtol=2e-2), (out, ref)

    print("KERNEL_OK")
</pallas_src>

<mosaic_0001>
module attributes {stable_mosaic.version = 11 : i64} {
  func.func @kernel(%arg0: i32, %arg1: memref<4x8x128xf32, #tpu.memory_space<vmem>>, %arg2: memref<4x8x128xf32, #tpu.memory_space<vmem>>, %arg3: memref<8x1xi32, #tpu.memory_space<vmem>>, %arg4: memref<1xi32, #tpu.memory_space<smem>>, %arg5: memref<32x128xf32, #tpu.memory_space<vmem>>, %arg6: memref<32x128xf32, #tpu.memory_space<vmem>>, %arg7: memref<32x5xf32, #tpu.memory_space<vmem>>, %arg8: memref<32x5xf32, #tpu.memory_space<vmem>>, %arg9: memref<1x5xf32, #tpu.memory_space<vmem>>, %arg10: memref<8x5xf32, #tpu.memory_space<vmem>>, %arg11: memref<8x32xf32, #tpu.memory_space<vmem>>, %arg12: memref<8x32xf32, #tpu.memory_space<vmem>>, %arg13: memref<8x32xf32, #tpu.memory_space<vmem>>, %arg14: memref<8x32xf32, #tpu.memory_space<vmem>>, %arg15: memref<8x32xf32, #tpu.memory_space<vmem>>, %arg16: memref<8x32xf32, #tpu.memory_space<vmem>>) attributes {dimension_semantics = [#tpu.dimension_semantics<arbitrary>], iteration_bounds = array<i64: 2>, scalar_prefetch = 0 : i64, scratch_operands = 6 : i64, tpu.core_type = #tpu.core_type<tc>, window_params = [{transform_indices = @transform_0, window_bounds = array<i64: 4, 8, 128>}, {transform_indices = @transform_1, window_bounds = array<i64: 4, 8, 128>}, {pipeline_mode = #tpu.pipeline_mode<synchronous>, transform_indices = @transform_2, window_bounds = array<i64: 8, 1>}, {transform_indices = @transform_3, window_bounds = array<i64: 1>}, {pipeline_mode = #tpu.pipeline_mode<synchronous>, transform_indices = @transform_4, window_bounds = array<i64: 32, 128>}, {pipeline_mode = #tpu.pipeline_mode<synchronous>, transform_indices = @transform_5, window_bounds = array<i64: 32, 128>}, {pipeline_mode = #tpu.pipeline_mode<synchronous>, transform_indices = @transform_6, window_bounds = array<i64: 32, 5>}, {pipeline_mode = #tpu.pipeline_mode<synchronous>, transform_indices = @transform_7, window_bounds = array<i64: 32, 5>}, {pipeline_mode = #tpu.pipeline_mode<synchronous>, transform_indices = @transform_8, window_bounds = array<i64: 1, 5>}, {pipeline_mode = #tpu.pipeline_mode<synchronous>, transform_indices = @transform_9, window_bounds = array<i64: 8, 5>}]} {
    %c0_i32 = arith.constant 0 : i32
    %0 = arith.cmpi eq, %arg0, %c0_i32 : i32
    %1 = arith.extui %0 : i1 to i32
    %c0_i32_0 = arith.constant 0 : i32
    %2 = arith.cmpi ne, %1, %c0_i32_0 : i32
    scf.if %2 {
      %cst_232 = arith.constant 0.000000e+00 : f32
      %452 = vector.broadcast %cst_232 : f32 to vector<8x32xf32>
      %c0_233 = arith.constant 0 : index
      %c0_234 = arith.constant 0 : index
      %453 = vector.load %arg11[%c0_233, %c0_234] : memref<8x32xf32, #tpu.memory_space<vmem>>, vector<8x32xf32>
      tpu.vector_store %arg11[%c0_233, %c0_234], %452 {strides = array<i32>} : memref<8x32xf32, #tpu.memory_space<vmem>>, vector<8x32xf32>,
      %c0_235 = arith.constant 0 : index
      %c0_236 = arith.constant 0 : index
      %454 = vector.load %arg12[%c0_235, %c0_236] : memref<8x32xf32, #tpu.memory_space<vmem>>, vector<8x32xf32>
      tpu.vector_store %arg12[%c0_235, %c0_236], %452 {strides = array<i32>} : memref<8x32xf32, #tpu.memory_space<vmem>>, vector<8x32xf32>,
      %c0_237 = arith.constant 0 : index
      %c0_238 = arith.constant 0 : index
      %455 = vector.load %arg13[%c0_237, %c0_238] : memref<8x32xf32, #tpu.memory_space<vmem>>, vector<8x32xf32>
      tpu.vector_store %arg13[%c0_237, %c0_238], %452 {strides = array<i32>} : memref<8x32xf32, #tpu.memory_space<vmem>>, vector<8x32xf32>,
      %c0_239 = arith.constant 0 : index
      %c0_240 = arith.constant 0 : index
      %456 = vector.load %arg14[%c0_239, %c0_240] : memref<8x32xf32, #tpu.memory_space<vmem>>, vector<8x32xf32>
      tpu.vector_store %arg14[%c0_239, %c0_240], %452 {strides = array<i32>} : memref<8x32xf32, #tpu.memory_space<vmem>>, vector<8x32xf32>,
      %cst_241 = arith.constant 0xFF800000 : f32
      %457 = vector.broadcast %cst_241 : f32 to vector<8x32xf32>
      %c0_242 = arith.constant 0 : index
      %c0_243 = arith.constant 0 : index
      %458 = vector.load %arg15[%c0_242, %c0_243] : memref<8x32xf32, #tpu.memory_space<vmem>>, vector<8x32xf32>
      tpu.vector_store %arg15[%c0_242, %c0_243], %457 {strides = array<i32>} : memref<8x32xf32, #tpu.memory_space<vmem>>, vector<8x32xf32>,
      %c0_244 = arith.constant 0 : index
      %c0_245 = arith.constant 0 : index
      %459 = vector.load %arg16[%c0_244, %c0_245] : memref<8x32xf32, #tpu.memory_space<vmem>>, vector<8x32xf32>
      tpu.vector_store %arg16[%c0_244, %c0_245], %457 {strides = array<i32>} : memref<8x32xf32, #tpu.memory_space<vmem>>, vector<8x32xf32>,
    } else {
    }
    %c0 = arith.constant 0 : index
    %c0_1 = arith.constant 0 : index
    %3 = vector.load %arg3[%c0, %c0_1] : memref<8x1xi32, #tpu.memory_space<vmem>>, vector<8x1xi32>
    %c0_2 = arith.constant 0 : index
    %4 = memref.load %arg4[%c0_2] : memref<1xi32, #tpu.memory_space<smem>>
    %c4_i32 = arith.constant 4 : i32
    %5 = arith.muli %arg0, %c4_i32 : i32
    %c0_i32_3 = arith.constant 0 : i32
    %6 = arith.addi %5, %c0_i32_3 : i32
    %c0_4 = arith.constant 0 : index
    %c0_5 = arith.constant 0 : index
    %c0_6 = arith.constant 0 : index
    %7 = vector.load %arg1[%c0_4, %c0_5, %c0_6] : memref<4x8x128xf32, #tpu.memory_space<vmem>>, vector<1x8x128xf32>
    %8 = vector.shape_cast %7 : vector<1x8x128xf32> to vector<8x128xf32>
    %c0_7 = arith.constant 0 : index
    %c0_8 = arith.constant 0 : index
    %9 = vector.load %arg11[%c0_7, %c0_8] : memref<8x32xf32, #tpu.memory_space<vmem>>, vector<8x32xf32>
    %c0_9 = arith.constant 0 : index
    %c0_10 = arith.constant 0 : index
    %10 = vector.load %arg5[%c0_9, %c0_10] : memref<32x128xf32, #tpu.memory_space<vmem>>, vector<32x128xf32>
    %cst = arith.constant dense<0.000000e+00> : vector<8x128xf32>
    %11 = tpu.matmul %9, %10, %cst {dimension_numbers = #tpu.dot_dimension_numbers<[1], [0], [0], [1], [0, 0, 1, 1], [], []>} : vector<8x32xf32>, vector<32x128xf32>, vector<8x128xf32> -> vector<8x128xf32>
    %12 = arith.addf %8, %11 : vector<8x128xf32>
    %13 = vector.extract_strided_slice %12 {offsets = [0, 0], sizes = [8, 32], strides = [1, 1]} : vector<8x128xf32> to vector<8x32xf32>
    %14 = arith.negf %13 : vector<8x32xf32>
    %15 = math.exp %14 : vector<8x32xf32>
    %cst_11 = arith.constant 1.000000e+00 : f32
    %16 = vector.broadcast %cst_11 : f32 to vector<8x32xf32>
    %17 = arith.addf %16, %15 : vector<8x32xf32>
    %18 = arith.divf %16, %17 : vector<8x32xf32>
    %19 = vector.extract_strided_slice %12 {offsets = [0, 32], sizes = [8, 32], strides = [1, 1]} : vector<8x128xf32> to vector<8x32xf32>
    %20 = arith.negf %19 : vector<8x32xf32>
    %21 = math.exp %20 : vector<8x32xf32>
    %cst_12 = arith.constant 1.000000e+00 : f32
    %22 = vector.broadcast %cst_12 : f32 to vector<8x32xf32>
    %23 = arith.addf %22, %21 : vector<8x32xf32>
    %24 = arith.divf %22, %23 : vector<8x32xf32>
    %25 = vector.extract_strided_slice %12 {offsets = [0, 64], sizes = [8, 32], strides = [1, 1]} : vector<8x128xf32> to vector<8x32xf32>
    %26 = math.tanh %25 : vector<8x32xf32>
    %27 = vector.extract_strided_slice %12 {offsets = [0, 96], sizes = [8, 32], strides = [1, 1]} : vector<8x128xf32> to vector<8x32xf32>
    %28 = arith.negf %27 : vector<8x32xf32>
    %29 = math.exp %28 : vector<8x32xf32>
    %cst_13 = arith.constant 1.000000e+00 : f32
    %30 = vector.broadcast %cst_13 : f32 to vector<8x32xf32>
    %31 = arith.addf %30, %29 : vector<8x32xf32>
    %32 = arith.divf %30, %31 : vector<8x32xf32>
    %c0_14 = arith.constant 0 : index
    %c0_15 = arith.constant 0 : index
    %33 = vector.load %arg12[%c0_14, %c0_15] : memref<8x32xf32, #tpu.memory_space<vmem>>, vector<8x32xf32>
    %34 = arith.mulf %24, %33 : vector<8x32xf32>
    %35 = arith.mulf %18, %26 : vector<8x32xf32>
    %36 = arith.addf %34, %35 : vector<8x32xf32>
    %37 = math.tanh %36 : vector<8x32xf32>
    %38 = arith.mulf %32, %37 : vector<8x32xf32>
    %39 = vector.broadcast %6 : i32 to vector<8x1xi32>
    %40 = arith.cmpi slt, %39, %3 : vector<8x1xi32>
    %c0_16 = arith.constant 0 : index
    %c0_17 = arith.constant 0 : index
    %41 = vector.load %arg11[%c0_16, %c0_17] : memref<8x32xf32, #tpu.memory_space<vmem>>, vector<8x32xf32>
    %42 = vector.shape_cast %40 : vector<8x1xi1> to vector<8x1xi1>
    %43 = vector.broadcast %42 : vector<8x1xi1> to vector<8x32xi1>
    %44 = arith.select %43, %38, %41 : vector<8x32xi1>, vector<8x32xf32>
    %c0_18 = arith.constant 0 : index
    %c0_19 = arith.constant 0 : index
    %45 = vector.load %arg11[%c0_18, %c0_19] : memref<8x32xf32, #tpu.memory_space<vmem>>, vector<8x32xf32>
    tpu.vector_store %arg11[%c0_18, %c0_19], %44 {strides = array<i32>} : memref<8x32xf32, #tpu.memory_space<vmem>>, vector<8x32xf32>,
    %c0_20 = arith.constant 0 : index
    %c0_21 = arith.constant 0 : index
    %46 = vector.load %arg12[%c0_20, %c0_21] : memref<8x32xf32, #tpu.memory_space<vmem>>, vector<8x32xf32>
    %47 = vector.shape_cast %40 : vector<8x1xi1> to vector<8x1xi1>
    %48 = vector.broadcast %47 : vector<8x1xi1> to vector<8x32xi1>
    %49 = arith.select %48, %36, %46 : vector<8x32xi1>, vector<8x32xf32>
    %c0_22 = arith.constant 0 : index
    %c0_23 = arith.constant 0 : index
    %50 = vector.load %arg12[%c0_22, %c0_23] : memref<8x32xf32, #tpu.memory_space<vmem>>, vector<8x32xf32>
    tpu.vector_store %arg12[%c0_22, %c0_23], %49 {strides = array<i32>} : memref<8x32xf32, #tpu.memory_space<vmem>>, vector<8x32xf32>,
    %51 = arith.cmpi slt, %6, %4 : i32
    %cst_24 = arith.constant 0.000000e+00 : f32
    %cst_25 = arith.constant 0xFF800000 : f32
    %52 = arith.select %51, %cst_24, %cst_25 : f32
    %c0_26 = arith.constant 0 : index
    %c0_27 = arith.constant 0 : index
    %53 = vector.load %arg15[%c0_26, %c0_27] : memref<8x32xf32, #tpu.memory_space<vmem>>, vector<8x32xf32>
    %54 = vector.shape_cast %40 : vector<8x1xi1> to vector<8x1xi1>
    %55 = vector.broadcast %54 : vector<8x1xi1> to vector<8x32xi1>
    %56 = vector.broadcast %52 : f32 to vector<8x32xf32>
    %57 = arith.select %55, %38, %56 : vector<8x32xi1>, vector<8x32xf32>
    %58 = arith.maximumf %53, %57 : vector<8x32xf32>
    %c0_28 = arith.constant 0 : index
    %c0_29 = arith.constant 0 : index
    %59 = vector.load %arg15[%c0_28, %c0_29] : memref<8x32xf32, #tpu.memory_space<vmem>>, vector<8x32xf32>
    tpu.vector_store %arg15[%c0_28, %c0_29], %58 {strides = array<i32>} : memref<8x32xf32, #tpu.memory_space<vmem>>, vector<8x32xf32>,
    %c4_i32_30 = arith.constant 4 : i32
    %60 = arith.muli %arg0, %c4_i32_30 : i32
    %c0_i32_31 = arith.constant 0 : i32
    %61 = arith.addi %60, %c0_i32_31 : i32
    %c7_i32 = arith.constant 7 : i32
    %62 = arith.subi %c7_i32, %61 : i32
    %c3 = arith.constant 3 : index
    %c0_32 = arith.constant 0 : index
    %c0_33 = arith.constant 0 : index
    %63 = vector.load %arg2[%c3, %c0_32, %c0_33] : memref<4x8x128xf32, #tpu.memory_space<vmem>>, vector<1x8x128xf32>
    %64 = vector.shape_cast %63 : vector<1x8x128xf32> to vector<8x128xf32>
    %c0_34 = arith.constant 0 : index
    %c0_35 = arith.constant 0 : index
    %65 = vector.load %arg13[%c0_34, %c0_35] : memref<8x32xf32, #tpu.memory_space<vmem>>, vector<8x32xf32>
    %c0_36 = arith.constant 0 : index
    %c0_37 = arith.constant 0 : index
    %66 = vector.load %arg6[%c0_36, %c0_37] : memref<32x128xf32, #tpu.memory_space<vmem>>, vector<32x128xf32>
    %cst_38 = arith.constant dense<0.000000e+00> : vector<8x128xf32>
    %67 = tpu.matmul %65, %66, %cst_38 {dimension_numbers = #tpu.dot_dimension_numbers<[1], [0], [0], [1], [0, 0, 1, 1], [], []>} : vector<8x32xf32>, vector<32x128xf32>, vector<8x128xf32> -> vector<8x128xf32>
    %68 = arith.addf %64, %67 : vector<8x128xf32>
    %69 = vector.extract_strided_slice %68 {offsets = [0, 0], sizes = [8, 32], strides = [1, 1]} : vector<8x128xf32> to vector<8x32xf32>
    %70 = arith.negf %69 : vector<8x32xf32>
    %71 = math.exp %70 : vector<8x32xf32>
    %cst_39 = arith.constant 1.000000e+00 : f32
    %72 = vector.broadcast %cst_39 : f32 to vector<8x32xf32>
    %73 = arith.addf %72, %71 : vector<8x32xf32>
    %74 = arith.divf %72, %73 : vector<8x32xf32>
    %75 = vector.extract_strided_slice %68 {offsets = [0, 32], sizes = [8, 32], strides = [1, 1]} : vector<8x128xf32> to vector<8x32xf32>
    %76 = arith.negf %75 : vector<8x32xf32>
    %77 = math.exp %76 : vector<8x32xf32>
    %cst_40 = arith.constant 1.000000e+00 : f32
    %78 = vector.broadcast %cst_40 : f32 to vector<8x32xf32>
    %79 = arith.addf %78, %77 : vector<8x32xf32>
    %80 = arith.divf %78, %79 : vector<8x32xf32>
    %81 = vector.extract_strided_slice %68 {offsets = [0, 64], sizes = [8, 32], strides = [1, 1]} : vector<8x128xf32> to vector<8x32xf32>
    %82 = math.tanh %81 : vector<8x32xf32>
    %83 = vector.extract_strided_slice %68 {offsets = [0, 96], sizes = [8, 32], strides = [1, 1]} : vector<8x128xf32> to vector<8x32xf32>
    %84 = arith.negf %83 : vector<8x32xf32>
    %85 = math.exp %84 : vector<8x32xf32>
    %cst_41 = arith.constant 1.000000e+00 : f32
    %86 = vector.broadcast %cst_41 : f32 to vector<8x32xf32>
    %87 = arith.addf %86, %85 : vector<8x32xf32>
    %88 = arith.divf %86, %87 : vector<8x32xf32>
    %c0_42 = arith.constant 0 : index
    %c0_43 = arith.constant 0 : index
    %89 = vector.load %arg14[%c0_42, %c0_43] : memref<8x32xf32, #tpu.memory_space<vmem>>, vector<8x32xf32>
    %90 = arith.mulf %80, %89 : vector<8x32xf32>
    %91 = arith.mulf %74, %82 : vector<8x32xf32>
    %92 = arith.addf %90, %91 : vector<8x32xf32>
    %93 = math.tanh %92 : vector<8x32xf32>
    %94 = arith.mulf %88, %93 : vector<8x32xf32>
    %95 = vector.broadcast %62 : i32 to vector<8x1xi32>
    %96 = arith.cmpi slt, %95, %3 : vector<8x1xi32>
    %c0_44 = arith.constant 0 : index
    %c0_45 = arith.constant 0 : index
    %97 = vector.load %arg13[%c0_44, %c0_45] : memref<8x32xf32, #tpu.memory_space<vmem>>, vector<8x32xf32>
    %98 = vector.shape_cast %96 : vector<8x1xi1> to vector<8x1xi1>
    %99 = vector.broadcast %98 : vector<8x1xi1> to vector<8x32xi1>
    %100 = arith.select %99, %94, %97 : vector<8x32xi1>, vector<8x32xf32>
    %c0_46 = arith.constant 0 : index
    %c0_47 = arith.constant 0 : index
    %101 = vector.load %arg13[%c0_46, %c0_47] : memref<8x32xf32, #tpu.memory_space<vmem>>, vector<8x32xf32>
    tpu.vector_store %arg13[%c0_46, %c0_47], %100 {strides = array<i32>} : memref<8x32xf32, #tpu.memory_space<vmem>>, vector<8x32xf32>,
    %c0_48 = arith.constant 0 : index
    %c0_49 = arith.constant 0 : index
    %102 = vector.load %arg14[%c0_48, %c0_49] : memref<8x32xf32, #tpu.memory_space<vmem>>, vector<8x32xf32>
    %103 = vector.shape_cast %96 : vector<8x1xi1> to vector<8x1xi1>
    %104 = vector.broadcast %103 : vector<8x1xi1> to vector<8x32xi1>
    %105 = arith.select %104, %92, %102 : vector<8x32xi1>, vector<8x32xf32>
    %c0_50 = arith.constant 0 : index
    %c0_51 = arith.constant 0 : index
    %106 = vector.load %arg14[%c0_50, %c0_51] : memref<8x32xf32, #tpu.memory_space<vmem>>, vector<8x32xf32>
    tpu.vector_store %arg14[%c0_50, %c0_51], %105 {strides = array<i32>} : memref<8x32xf32, #tpu.memory_space<vmem>>, vector<8x32xf32>,
    %107 = arith.cmpi slt, %62, %4 : i32
    %cst_52 = arith.constant 0.000000e+00 : f32
    %cst_53 = arith.constant 0xFF800000 : f32
    %108 = arith.select %107, %cst_52, %cst_53 : f32
    %c0_54 = arith.constant 0 : index
    %c0_55 = arith.constant 0 : index
    %109 = vector.load %arg16[%c0_54, %c0_55] : memref<8x32xf32, #tpu.memory_space<vmem>>, vector<8x32xf32>
    %110 = vector.shape_cast %96 : vector<8x1xi1> to vector<8x1xi1>
    %111 = vector.broadcast %110 : vector<8x1xi1> to vector<8x32xi1>
    %112 = vector.broadcast %108 : f32 to vector<8x32xf32>
    %113 = arith.select %111, %94, %112 : vector<8x32xi1>, vector<8x32xf32>
    %114 = arith.maximumf %109, %113 : vector<8x32xf32>
    %c0_56 = arith.constant 0 : index
    %c0_57 = arith.constant 0 : index
    %115 = vector.load %arg16[%c0_56, %c0_57] : memref<8x32xf32, #tpu.memory_space<vmem>>, vector<8x32xf32>
    tpu.vector_store %arg16[%c0_56, %c0_57], %114 {strides = array<i32>} : memref<8x32xf32, #tpu.memory_space<vmem>>, vector<8x32xf32>,
    %c4_i32_58 = arith.constant 4 : i32
    %116 = arith.muli %arg0, %c4_i32_58 : i32
    %c1_i32 = arith.constant 1 : i32
    %117 = arith.addi %116, %c1_i32 : i32
    %c1 = arith.constant 1 : index
    %c0_59 = arith.constant 0 : index
    %c0_60 = arith.constant 0 : index
    %118 = vector.load %arg1[%c1, %c0_59, %c0_60] : memref<4x8x128xf32, #tpu.memory_space<vmem>>, vector<1x8x128xf32>
    %119 = vector.shape_cast %118 : vector<1x8x128xf32> to vector<8x128xf32>
    %c0_61 = arith.constant 0 : index
    %c0_62 = arith.constant 0 : index
    %120 = vector.load %arg11[%c0_61, %c0_62] : memref<8x32xf32, #tpu.memory_space<vmem>>, vector<8x32xf32>
    %c0_63 = arith.constant 0 : index
    %c0_64 = arith.constant 0 : index
    %121 = vector.load %arg5[%c0_63, %c0_64] : memref<32x128xf32, #tpu.memory_space<vmem>>, vector<32x128xf32>
    %cst_65 = arith.constant dense<0.000000e+00> : vector<8x128xf32>
    %122 = tpu.matmul %120, %121, %cst_65 {dimension_numbers = #tpu.dot_dimension_numbers<[1], [0], [0], [1], [0, 0, 1, 1], [], []>} : vector<8x32xf32>, vector<32x128xf32>, vector<8x128xf32> -> vector<8x128xf32>
    %123 = arith.addf %119, %122 : vector<8x128xf32>
    %124 = vector.extract_strided_slice %123 {offsets = [0, 0], sizes = [8, 32], strides = [1, 1]} : vector<8x128xf32> to vector<8x32xf32>
    %125 = arith.negf %124 : vector<8x32xf32>
    %126 = math.exp %125 : vector<8x32xf32>
    %cst_66 = arith.constant 1.000000e+00 : f32
    %127 = vector.broadcast %cst_66 : f32 to vector<8x32xf32>
    %128 = arith.addf %127, %126 : vector<8x32xf32>
    %129 = arith.divf %127, %128 : vector<8x32xf32>
    %130 = vector.extract_strided_slice %123 {offsets = [0, 32], sizes = [8, 32], strides = [1, 1]} : vector<8x128xf32> to vector<8x32xf32>
    %131 = arith.negf %130 : vector<8x32xf32>
    %132 = math.exp %131 : vector<8x32xf32>
    %cst_67 = arith.constant 1.000000e+00 : f32
    %133 = vector.broadcast %cst_67 : f32 to vector<8x32xf32>
    %134 = arith.addf %133, %132 : vector<8x32xf32>
    %135 = arith.divf %133, %134 : vector<8x32xf32>
    %136 = vector.extract_strided_slice %123 {offsets = [0, 64], sizes = [8, 32], strides = [1, 1]} : vector<8x128xf32> to vector<8x32xf32>
    %137 = math.tanh %136 : vector<8x32xf32>
    %138 = vector.extract_strided_slice %123 {offsets = [0, 96], sizes = [8, 32], strides = [1, 1]} : vector<8x128xf32> to vector<8x32xf32>
    %139 = arith.negf %138 : vector<8x32xf32>
    %140 = math.exp %139 : vector<8x32xf32>
    %cst_68 = arith.constant 1.000000e+00 : f32
    %141 = vector.broadcast %cst_68 : f32 to vector<8x32xf32>
    %142 = arith.addf %141, %140 : vector<8x32xf32>
    %143 = arith.divf %141, %142 : vector<8x32xf32>
    %c0_69 = arith.constant 0 : index
    %c0_70 = arith.constant 0 : index
    %144 = vector.load %arg12[%c0_69, %c0_70] : memref<8x32xf32, #tpu.memory_space<vmem>>, vector<8x32xf32>
    %145 = arith.mulf %135, %144 : vector<8x32xf32>
    %146 = arith.mulf %129, %137 : vector<8x32xf32>
    %147 = arith.addf %145, %146 : vector<8x32xf32>
    %148 = math.tanh %147 : vector<8x32xf32>
    %149 = arith.mulf %143, %148 : vector<8x32xf32>
    %150 = vector.broadcast %117 : i32 to vector<8x1xi32>
    %151 = arith.cmpi slt, %150, %3 : vector<8x1xi32>
    %c0_71 = arith.constant 0 : index
    %c0_72 = arith.constant 0 : index
    %152 = vector.load %arg11[%c0_71, %c0_72] : memref<8x32xf32, #tpu.memory_space<vmem>>, vector<8x32xf32>
    %153 = vector.shape_cast %151 : vector<8x1xi1> to vector<8x1xi1>
    %154 = vector.broadcast %153 : vector<8x1xi1> to vector<8x32xi1>
    %155 = arith.select %154, %149, %152 : vector<8x32xi1>, vector<8x32xf32>
    %c0_73 = arith.constant 0 : index
    %c0_74 = arith.constant 0 : index
    %156 = vector.load %arg11[%c0_73, %c0_74] : memref<8x32xf32, #tpu.memory_space<vmem>>, vector<8x32xf32>
    tpu.vector_store %arg11[%c0_73, %c0_74], %155 {strides = array<i32>} : memref<8x32xf32, #tpu.memory_space<vmem>>, vector<8x32xf32>,
    %c0_75 = arith.constant 0 : index
    %c0_76 = arith.constant 0 : index
    %157 = vector.load %arg12[%c0_75, %c0_76] : memref<8x32xf32, #tpu.memory_space<vmem>>, vector<8x32xf32>
    %158 = vector.shape_cast %151 : vector<8x1xi1> to vector<8x1xi1>
    %159 = vector.broadcast %158 : vector<8x1xi1> to vector<8x32xi1>
    %160 = arith.select %159, %147, %157 : vector<8x32xi1>, vector<8x32xf32>
    %c0_77 = arith.constant 0 : index
    %c0_78 = arith.constant 0 : index
    %161 = vector.load %arg12[%c0_77, %c0_78] : memref<8x32xf32, #tpu.memory_space<vmem>>, vector<8x32xf32>
    tpu.vector_store %arg12[%c0_77, %c0_78], %160 {strides = array<i32>} : memref<8x32xf32, #tpu.memory_space<vmem>>, vector<8x32xf32>,
    %162 = arith.cmpi slt, %117, %4 : i32
    %cst_79 = arith.constant 0.000000e+00 : f32
    %cst_80 = arith.constant 0xFF800000 : f32
    %163 = arith.select %162, %cst_79, %cst_80 : f32
    %c0_81 = arith.constant 0 : index
    %c0_82 = arith.constant 0 : index
    %164 = vector.load %arg15[%c0_81, %c0_82] : memref<8x32xf32, #tpu.memory_space<vmem>>, vector<8x32xf32>
    %165 = vector.shape_cast %151 : vector<8x1xi1> to vector<8x1xi1>
    %166 = vector.broadcast %165 : vector<8x1xi1> to vector<8x32xi1>
    %167 = vector.broadcast %163 : f32 to vector<8x32xf32>
    %168 = arith.select %166, %149, %167 : vector<8x32xi1>, vector<8x32xf32>
    %169 = arith.maximumf %164, %168 : vector<8x32xf32>
    %c0_83 = arith.constant 0 : index
    %c0_84 = arith.constant 0 : index
    %170 = vector.load %arg15[%c0_83, %c0_84] : memref<8x32xf32, #tpu.memory_space<vmem>>, vector<8x32xf32>
    tpu.vector_store %arg15[%c0_83, %c0_84], %169 {strides = array<i32>} : memref<8x32xf32, #tpu.memory_space<vmem>>, vector<8x32xf32>,
    %c4_i32_85 = arith.constant 4 : i32
    %171 = arith.muli %arg0, %c4_i32_85 : i32
    %c1_i32_86 = arith.constant 1 : i32
    %172 = arith.addi %171, %c1_i32_86 : i32
    %c7_i32_87 = arith.constant 7 : i32
    %173 = arith.subi %c7_i32_87, %172 : i32
    %c2 = arith.constant 2 : index
    %c0_88 = arith.constant 0 : index
    %c0_89 = arith.constant 0 : index
    %174 = vector.load %arg2[%c2, %c0_88, %c0_89] : memref<4x8x128xf32, #tpu.memory_space<vmem>>, vector<1x8x128xf32>
    %175 = vector.shape_cast %174 : vector<1x8x128xf32> to vector<8x128xf32>
    %c0_90 = arith.constant 0 : index
    %c0_91 = arith.constant 0 : index
    %176 = vector.load %arg13[%c0_90, %c0_91] : memref<8x32xf32, #tpu.memory_space<vmem>>, vector<8x32xf32>
    %c0_92 = arith.constant 0 : index
    %c0_93 = arith.constant 0 : index
    %177 = vector.load %arg6[%c0_92, %c0_93] : memref<32x128xf32, #tpu.memory_space<vmem>>, vector<32x128xf32>
    %cst_94 = arith.constant dense<0.000000e+00> : vector<8x128xf32>
    %178 = tpu.matmul %176, %177, %cst_94 {dimension_numbers = #tpu.dot_dimension_numbers<[1], [0], [0], [1], [0, 0, 1, 1], [], []>} : vector<8x32xf32>, vector<32x128xf32>, vector<8x128xf32> -> vector<8x128xf32>
    %179 = arith.addf %175, %178 : vector<8x128xf32>
    %180 = vector.extract_strided_slice %179 {offsets = [0, 0], sizes = [8, 32], strides = [1, 1]} : vector<8x128xf32> to vector<8x32xf32>
    %181 = arith.negf %180 : vector<8x32xf32>
    %182 = math.exp %181 : vector<8x32xf32>
    %cst_95 = arith.constant 1.000000e+00 : f32
    %183 = vector.broadcast %cst_95 : f32 to vector<8x32xf32>
    %184 = arith.addf %183, %182 : vector<8x32xf32>
    %185 = arith.divf %183, %184 : vector<8x32xf32>
    %186 = vector.extract_strided_slice %179 {offsets = [0, 32], sizes = [8, 32], strides = [1, 1]} : vector<8x128xf32> to vector<8x32xf32>
    %187 = arith.negf %186 : vector<8x32xf32>
    %188 = math.exp %187 : vector<8x32xf32>
    %cst_96 = arith.constant 1.000000e+00 : f32
    %189 = vector.broadcast %cst_96 : f32 to vector<8x32xf32>
    %190 = arith.addf %189, %188 : vector<8x32xf32>
    %191 = arith.divf %189, %190 : vector<8x32xf32>
    %192 = vector.extract_strided_slice %179 {offsets = [0, 64], sizes = [8, 32], strides = [1, 1]} : vector<8x128xf32> to vector<8x32xf32>
    %193 = math.tanh %192 : vector<8x32xf32>
    %194 = vector.extract_strided_slice %179 {offsets = [0, 96], sizes = [8, 32], strides = [1, 1]} : vector<8x128xf32> to vector<8x32xf32>
    %195 = arith.negf %194 : vector<8x32xf32>
    %196 = math.exp %195 : vector<8x32xf32>
    %cst_97 = arith.constant 1.000000e+00 : f32
    %197 = vector.broadcast %cst_97 : f32 to vector<8x32xf32>
    %198 = arith.addf %197, %196 : vector<8x32xf32>
    %199 = arith.divf %197, %198 : vector<8x32xf32>
    %c0_98 = arith.constant 0 : index
    %c0_99 = arith.constant 0 : index
    %200 = vector.load %arg14[%c0_98, %c0_99] : memref<8x32xf32, #tpu.memory_space<vmem>>, vector<8x32xf32>
    %201 = arith.mulf %191, %200 : vector<8x32xf32>
    %202 = arith.mulf %185, %193 : vector<8x32xf32>
    %203 = arith.addf %201, %202 : vector<8x32xf32>
    %204 = math.tanh %203 : vector<8x32xf32>
    %205 = arith.mulf %199, %204 : vector<8x32xf32>
    %206 = vector.broadcast %173 : i32 to vector<8x1xi32>
    %207 = arith.cmpi slt, %206, %3 : vector<8x1xi32>
    %c0_100 = arith.constant 0 : index
    %c0_101 = arith.constant 0 : index
    %208 = vector.load %arg13[%c0_100, %c0_101] : memref<8x32xf32, #tpu.memory_space<vmem>>, vector<8x32xf32>
    %209 = vector.shape_cast %207 : vector<8x1xi1> to vector<8x1xi1>
    %210 = vector.broadcast %209 : vector<8x1xi1> to vector<8x32xi1>
    %211 = arith.select %210, %205, %208 : vector<8x32xi1>, vector<8x32xf32>
    %c0_102 = arith.constant 0 : index
    %c0_103 = arith.constant 0 : index
    %212 = vector.load %arg13[%c0_102, %c0_103] : memref<8x32xf32, #tpu.memory_space<vmem>>, vector<8x32xf32>
    tpu.vector_store %arg13[%c0_102, %c0_103], %211 {strides = array<i32>} : memref<8x32xf32, #tpu.memory_space<vmem>>, vector<8x32xf32>,
    %c0_104 = arith.constant 0 : index
    %c0_105 = arith.constant 0 : index
    %213 = vector.load %arg14[%c0_104, %c0_105] : memref<8x32xf32, #tpu.memory_space<vmem>>, vector<8x32xf32>
    %214 = vector.shape_cast %207 : vector<8x1xi1> to vector<8x1xi1>
    %215 = vector.broadcast %214 : vector<8x1xi1> to vector<8x32xi1>
    %216 = arith.select %215, %203, %213 : vector<8x32xi1>, vector<8x32xf32>
    %c0_106 = arith.constant 0 : index
    %c0_107 = arith.constant 0 : index
    %217 = vector.load %arg14[%c0_106, %c0_107] : memref<8x32xf32, #tpu.memory_space<vmem>>, vector<8x32xf32>
    tpu.vector_store %arg14[%c0_106, %c0_107], %216 {strides = array<i32>} : memref<8x32xf32, #tpu.memory_space<vmem>>, vector<8x32xf32>,
    %218 = arith.cmpi slt, %173, %4 : i32
    %cst_108 = arith.constant 0.000000e+00 : f32
    %cst_109 = arith.constant 0xFF800000 : f32
    %219 = arith.select %218, %cst_108, %cst_109 : f32
    %c0_110 = arith.constant 0 : index
    %c0_111 = arith.constant 0 : index
    %220 = vector.load %arg16[%c0_110, %c0_111] : memref<8x32xf32, #tpu.memory_space<vmem>>, vector<8x32xf32>
    %221 = vector.shape_cast %207 : vector<8x1xi1> to vector<8x1xi1>
    %222 = vector.broadcast %221 : vector<8x1xi1> to vector<8x32xi1>
    %223 = vector.broadcast %219 : f32 to vector<8x32xf32>
    %224 = arith.select %222, %205, %223 : vector<8x32xi1>, vector<8x32xf32>
    %225 = arith.maximumf %220, %224 : vector<8x32xf32>
    %c0_112 = arith.constant 0 : index
    %c0_113 = arith.constant 0 : index
    %226 = vector.load %arg16[%c0_112, %c0_113] : memref<8x32xf32, #tpu.memory_space<vmem>>, vector<8x32xf32>
    tpu.vector_store %arg16[%c0_112, %c0_113], %225 {strides = array<i32>} : memref<8x32xf32, #tpu.memory_space<vmem>>, vector<8x32xf32>,
    %c4_i32_114 = arith.constant 4 : i32
    %227 = arith.muli %arg0, %c4_i32_114 : i32
    %c2_i32 = arith.constant 2 : i32
    %228 = arith.addi %227, %c2_i32 : i32
    %c2_115 = arith.constant 2 : index
    %c0_116 = arith.constant 0 : index
    %c0_117 = arith.constant 0 : index
    %229 = vector.load %arg1[%c2_115, %c0_116, %c0_117] : memref<4x8x128xf32, #tpu.memory_space<vmem>>, vector<1x8x128xf32>
    %230 = vector.shape_cast %229 : vector<1x8x128xf32> to vector<8x128xf32>
    %c0_118 = arith.constant 0 : index
    %c0_119 = arith.constant 0 : index
    %231 = vector.load %arg11[%c0_118, %c0_119] : memref<8x32xf32, #tpu.memory_space<vmem>>, vector<8x32xf32>
    %c0_120 = arith.constant 0 : index
    %c0_121 = arith.constant 0 : index
    %232 = vector.load %arg5[%c0_120, %c0_121] : memref<32x128xf32, #tpu.memory_space<vmem>>, vector<32x128xf32>
    %cst_122 = arith.constant dense<0.000000e+00> : vector<8x128xf32>
    %233 = tpu.matmul %231, %232, %cst_122 {dimension_numbers = #tpu.dot_dimension_numbers<[1], [0], [0], [1], [0, 0, 1, 1], [], []>} : vector<8x32xf32>, vector<32x128xf32>, vector<8x128xf32> -> vector<8x128xf32>
    %234 = arith.addf %230, %233 : vector<8x128xf32>
    %235 = vector.extract_strided_slice %234 {offsets = [0, 0], sizes = [8, 32], strides = [1, 1]} : vector<8x128xf32> to vector<8x32xf32>
    %236 = arith.negf %235 : vector<8x32xf32>
    %237 = math.exp %236 : vector<8x32xf32>
    %cst_123 = arith.constant 1.000000e+00 : f32
    %238 = vector.broadcast %cst_123 : f32 to vector<8x32xf32>
    %239 = arith.addf %238, %237 : vector<8x32xf32>
    %240 = arith.divf %238, %239 : vector<8x32xf32>
    %241 = vector.extract_strided_slice %234 {offsets = [0, 32], sizes = [8, 32], strides = [1, 1]} : vector<8x128xf32> to vector<8x32xf32>
    %242 = arith.negf %241 : vector<8x32xf32>
    %243 = math.exp %242 : vector<8x32xf32>
    %cst_124 = arith.constant 1.000000e+00 : f32
    %244 = vector.broadcast %cst_124 : f32 to vector<8x32xf32>
    %245 = arith.addf %244, %243 : vector<8x32xf32>
    %246 = arith.divf %244, %245 : vector<8x32xf32>
    %247 = vector.extract_strided_slice %234 {offsets = [0, 64], sizes = [8, 32], strides = [1, 1]} : vector<8x128xf32> to vector<8x32xf32>
    %248 = math.tanh %247 : vector<8x32xf32>
    %249 = vector.extract_strided_slice %234 {offsets = [0, 96], sizes = [8, 32], strides = [1, 1]} : vector<8x128xf32> to vector<8x32xf32>
    %250 = arith.negf %249 : vector<8x32xf32>
    %251 = math.exp %250 : vector<8x32xf32>
    %cst_125 = arith.constant 1.000000e+00 : f32
    %252 = vector.broadcast %cst_125 : f32 to vector<8x32xf32>
    %253 = arith.addf %252, %251 : vector<8x32xf32>
    %254 = arith.divf %252, %253 : vector<8x32xf32>
    %c0_126 = arith.constant 0 : index
    %c0_127 = arith.constant 0 : index
    %255 = vector.load %arg12[%c0_126, %c0_127] : memref<8x32xf32, #tpu.memory_space<vmem>>, vector<8x32xf32>
    %256 = arith.mulf %246, %255 : vector<8x32xf32>
    %257 = arith.mulf %240, %248 : vector<8x32xf32>
    %258 = arith.addf %256, %257 : vector<8x32xf32>
    %259 = math.tanh %258 : vector<8x32xf32>
    %260 = arith.mulf %254, %259 : vector<8x32xf32>
    %261 = vector.broadcast %228 : i32 to vector<8x1xi32>
    %262 = arith.cmpi slt, %261, %3 : vector<8x1xi32>
    %c0_128 = arith.constant 0 : index
    %c0_129 = arith.constant 0 : index
    %263 = vector.load %arg11[%c0_128, %c0_129] : memref<8x32xf32, #tpu.memory_space<vmem>>, vector<8x32xf32>
    %264 = vector.shape_cast %262 : vector<8x1xi1> to vector<8x1xi1>
    %265 = vector.broadcast %264 : vector<8x1xi1> to vector<8x32xi1>
    %266 = arith.select %265, %260, %263 : vector<8x32xi1>, vector<8x32xf32>
    %c0_130 = arith.constant 0 : index
    %c0_131 = arith.constant 0 : index
    %267 = vector.load %arg11[%c0_130, %c0_131] : memref<8x32xf32, #tpu.memory_space<vmem>>, vector<8x32xf32>
    tpu.vector_store %arg11[%c0_130, %c0_131], %266 {strides = array<i32>} : memref<8x32xf32, #tpu.memory_space<vmem>>, vector<8x32xf32>,
    %c0_132 = arith.constant 0 : index
    %c0_133 = arith.constant 0 : index
    %268 = vector.load %arg12[%c0_132, %c0_133] : memref<8x32xf32, #tpu.memory_space<vmem>>, vector<8x32xf32>
    %269 = vector.shape_cast %262 : vector<8x1xi1> to vector<8x1xi1>
    %270 = vector.broadcast %269 : vector<8x1xi1> to vector<8x32xi1>
    %271 = arith.select %270, %258, %268 : vector<8x32xi1>, vector<8x32xf32>
    %c0_134 = arith.constant 0 : index
    %c0_135 = arith.constant 0 : index
    %272 = vector.load %arg12[%c0_134, %c0_135] : memref<8x32xf32, #tpu.memory_space<vmem>>, vector<8x32xf32>
    tpu.vector_store %arg12[%c0_134, %c0_135], %271 {strides = array<i32>} : memref<8x32xf32, #tpu.memory_space<vmem>>, vector<8x32xf32>,
    %273 = arith.cmpi slt, %228, %4 : i32
    %cst_136 = arith.constant 0.000000e+00 : f32
    %cst_137 = arith.constant 0xFF800000 : f32
    %274 = arith.select %273, %cst_136, %cst_137 : f32
    %c0_138 = arith.constant 0 : index
    %c0_139 = arith.constant 0 : index
    %275 = vector.load %arg15[%c0_138, %c0_139] : memref<8x32xf32, #tpu.memory_space<vmem>>, vector<8x32xf32>
    %276 = vector.shape_cast %262 : vector<8x1xi1> to vector<8x1xi1>
    %277 = vector.broadcast %276 : vector<8x1xi1> to vector<8x32xi1>
    %278 = vector.broadcast %274 : f32 to vector<8x32xf32>
    %279 = arith.select %277, %260, %278 : vector<8x32xi1>, vector<8x32xf32>
    %280 = arith.maximumf %275, %279 : vector<8x32xf32>
    %c0_140 = arith.constant 0 : index
    %c0_141 = arith.constant 0 : index
    %281 = vector.load %arg15[%c0_140, %c0_141] : memref<8x32xf32, #tpu.memory_space<vmem>>, vector<8x32xf32>
    tpu.vector_store %arg15[%c0_140, %c0_141], %280 {strides = array<i32>} : memref<8x32xf32, #tpu.memory_space<vmem>>, vector<8x32xf32>,
    %c4_i32_142 = arith.constant 4 : i32
    %282 = arith.muli %arg0, %c4_i32_142 : i32
    %c2_i32_143 = arith.constant 2 : i32
    %283 = arith.addi %282, %c2_i32_143 : i32
    %c7_i32_144 = arith.constant 7 : i32
    %284 = arith.subi %c7_i32_144, %283 : i32
    %c1_145 = arith.constant 1 : index
    %c0_146 = arith.constant 0 : index
    %c0_147 = arith.constant 0 : index
    %285 = vector.load %arg2[%c1_145, %c0_146, %c0_147] : memref<4x8x128xf32, #tpu.memory_space<vmem>>, vector<1x8x128xf32>
    %286 = vector.shape_cast %285 : vector<1x8x128xf32> to vector<8x128xf32>
    %c0_148 = arith.constant 0 : index
    %c0_149 = arith.constant 0 : index
    %287 = vector.load %arg13[%c0_148, %c0_149] : memref<8x32xf32, #tpu.memory_space<vmem>>, vector<8x32xf32>
    %c0_150 = arith.constant 0 : index
    %c0_151 = arith.constant 0 : index
    %288 = vector.load %arg6[%c0_150, %c0_151] : memref<32x128xf32, #tpu.memory_space<vmem>>, vector<32x128xf32>
    %cst_152 = arith.constant dense<0.000000e+00> : vector<8x128xf32>
    %289 = tpu.matmul %287, %288, %cst_152 {dimension_numbers = #tpu.dot_dimension_numbers<[1], [0], [0], [1], [0, 0, 1, 1], [], []>} : vector<8x32xf32>, vector<32x128xf32>, vector<8x128xf32> -> vector<8x128xf32>
    %290 = arith.addf %286, %289 : vector<8x128xf32>
    %291 = vector.extract_strided_slice %290 {offsets = [0, 0], sizes = [8, 32], strides = [1, 1]} : vector<8x128xf32> to vector<8x32xf32>
    %292 = arith.negf %291 : vector<8x32xf32>
    %293 = math.exp %292 : vector<8x32xf32>
    %cst_153 = arith.constant 1.000000e+00 : f32
    %294 = vector.broadcast %cst_153 : f32 to vector<8x32xf32>
    %295 = arith.addf %294, %293 : vector<8x32xf32>
    %296 = arith.divf %294, %295 : vector<8x32xf32>
    %297 = vector.extract_strided_slice %290 {offsets = [0, 32], sizes = [8, 32], strides = [1, 1]} : vector<8x128xf32> to vector<8x32xf32>
    %298 = arith.negf %297 : vector<8x32xf32>
    %299 = math.exp %298 : vector<8x32xf32>
    %cst_154 = arith.constant 1.000000e+00 : f32
    %300 = vector.broadcast %cst_154 : f32 to vector<8x32xf32>
    %301 = arith.addf %300, %299 : vector<8x32xf32>
    %302 = arith.divf %300, %301 : vector<8x32xf32>
    %303 = vector.extract_strided_slice %290 {offsets = [0, 64], sizes = [8, 32], strides = [1, 1]} : vector<8x128xf32> to vector<8x32xf32>
    %304 = math.tanh %303 : vector<8x32xf32>
    %305 = vector.extract_strided_slice %290 {offsets = [0, 96], sizes = [8, 32], strides = [1, 1]} : vector<8x128xf32> to vector<8x32xf32>
    %306 = arith.negf %305 : vector<8x32xf32>
    %307 = math.exp %306 : vector<8x32xf32>
    %cst_155 = arith.constant 1.000000e+00 : f32
    %308 = vector.broadcast %cst_155 : f32 to vector<8x32xf32>
    %309 = arith.addf %308, %307 : vector<8x32xf32>
    %310 = arith.divf %308, %309 : vector<8x32xf32>
    %c0_156 = arith.constant 0 : index
    %c0_157 = arith.constant 0 : index
    %311 = vector.load %arg14[%c0_156, %c0_157] : memref<8x32xf32, #tpu.memory_space<vmem>>, vector<8x32xf32>
    %312 = arith.mulf %302, %311 : vector<8x32xf32>
    %313 = arith.mulf %296, %304 : vector<8x32xf32>
    %314 = arith.addf %312, %313 : vector<8x32xf32>
    %315 = math.tanh %314 : vector<8x32xf32>
    %316 = arith.mulf %310, %315 : vector<8x32xf32>
    %317 = vector.broadcast %284 : i32 to vector<8x1xi32>
    %318 = arith.cmpi slt, %317, %3 : vector<8x1xi32>
    %c0_158 = arith.constant 0 : index
    %c0_159 = arith.constant 0 : index
    %319 = vector.load %arg13[%c0_158, %c0_159] : memref<8x32xf32, #tpu.memory_space<vmem>>, vector<8x32xf32>
    %320 = vector.shape_cast %318 : vector<8x1xi1> to vector<8x1xi1>
    %321 = vector.broadcast %320 : vector<8x1xi1> to vector<8x32xi1>
    %322 = arith.select %321, %316, %319 : vector<8x32xi1>, vector<8x32xf32>
    %c0_160 = arith.constant 0 : index
    %c0_161 = arith.constant 0 : index
    %323 = vector.load %arg13[%c0_160, %c0_161] : memref<8x32xf32, #tpu.memory_space<vmem>>, vector<8x32xf32>
    tpu.vector_store %arg13[%c0_160, %c0_161], %322 {strides = array<i32>} : memref<8x32xf32, #tpu.memory_space<vmem>>, vector<8x32xf32>,
    %c0_162 = arith.constant 0 : index
    %c0_163 = arith.constant 0 : index
    %324 = vector.load %arg14[%c0_162, %c0_163] : memref<8x32xf32, #tpu.memory_space<vmem>>, vector<8x32xf32>
    %325 = vector.shape_cast %318 : vector<8x1xi1> to vector<8x1xi1>
    %326 = vector.broadcast %325 : vector<8x1xi1> to vector<8x32xi1>
    %327 = arith.select %326, %314, %324 : vector<8x32xi1>, vector<8x32xf32>
    %c0_164 = arith.constant 0 : index
    %c0_165 = arith.constant 0 : index
    %328 = vector.load %arg14[%c0_164, %c0_165] : memref<8x32xf32, #tpu.memory_space<vmem>>, vector<8x32xf32>
    tpu.vector_store %arg14[%c0_164, %c0_165], %327 {strides = array<i32>} : memref<8x32xf32, #tpu.memory_space<vmem>>, vector<8x32xf32>,
    %329 = arith.cmpi slt, %284, %4 : i32
    %cst_166 = arith.constant 0.000000e+00 : f32
    %cst_167 = arith.constant 0xFF800000 : f32
    %330 = arith.select %329, %cst_166, %cst_167 : f32
    %c0_168 = arith.constant 0 : index
    %c0_169 = arith.constant 0 : index
    %331 = vector.load %arg16[%c0_168, %c0_169] : memref<8x32xf32, #tpu.memory_space<vmem>>, vector<8x32xf32>
    %332 = vector.shape_cast %318 : vector<8x1xi1> to vector<8x1xi1>
    %333 = vector.broadcast %332 : vector<8x1xi1> to vector<8x32xi1>
    %334 = vector.broadcast %330 : f32 to vector<8x32xf32>
    %335 = arith.select %333, %316, %334 : vector<8x32xi1>, vector<8x32xf32>
    %336 = arith.maximumf %331, %335 : vector<8x32xf32>
    %c0_170 = arith.constant 0 : index
    %c0_171 = arith.constant 0 : index
    %337 = vector.load %arg16[%c0_170, %c0_171] : memref<8x32xf32, #tpu.memory_space<vmem>>, vector<8x32xf32>
    tpu.vector_store %arg16[%c0_170, %c0_171], %336 {strides = array<i32>} : memref<8x32xf32, #tpu.memory_space<vmem>>, vector<8x32xf32>,
    %c4_i32_172 = arith.constant 4 : i32
    %338 = arith.muli %arg0, %c4_i32_172 : i32
    %c3_i32 = arith.constant 3 : i32
    %339 = arith.addi %338, %c3_i32 : i32
    %c3_173 = arith.constant 3 : index
    %c0_174 = arith.constant 0 : index
    %c0_175 = arith.constant 0 : index
    %340 = vector.load %arg1[%c3_173, %c0_174, %c0_175] : memref<4x8x128xf32, #tpu.memory_space<vmem>>, vector<1x8x128xf32>
    %341 = vector.shape_cast %340 : vector<1x8x128xf32> to vector<8x128xf32>
    %c0_176 = arith.constant 0 : index
    %c0_177 = arith.constant 0 : index
    %342 = vector.load %arg11[%c0_176, %c0_177] : memref<8x32xf32, #tpu.memory_space<vmem>>, vector<8x32xf32>
    %c0_178 = arith.constant 0 : index
    %c0_179 = arith.constant 0 : index
    %343 = vector.load %arg5[%c0_178, %c0_179] : memref<32x128xf32, #tpu.memory_space<vmem>>, vector<32x128xf32>
    %cst_180 = arith.constant dense<0.000000e+00> : vector<8x128xf32>
    %344 = tpu.matmul %342, %343, %cst_180 {dimension_numbers = #tpu.dot_dimension_numbers<[1], [0], [0], [1], [0, 0, 1, 1], [], []>} : vector<8x32xf32>, vector<32x128xf32>, vector<8x128xf32> -> vector<8x128xf32>
    %345 = arith.addf %341, %344 : vector<8x128xf32>
    %346 = vector.extract_strided_slice %345 {offsets = [0, 0], sizes = [8, 32], strides = [1, 1]} : vector<8x128xf32> to vector<8x32xf32>
    %347 = arith.negf %346 : vector<8x32xf32>
    %348 = math.exp %347 : vector<8x32xf32>
    %cst_181 = arith.constant 1.000000e+00 : f32
    %349 = vector.broadcast %cst_181 : f32 to vector<8x32xf32>
    %350 = arith.addf %349, %348 : vector<8x32xf32>
    %351 = arith.divf %349, %350 : vector<8x32xf32>
    %352 = vector.extract_strided_slice %345 {offsets = [0, 32], sizes = [8, 32], strides = [1, 1]} : vector<8x128xf32> to vector<8x32xf32>
    %353 = arith.negf %352 : vector<8x32xf32>
    %354 = math.exp %353 : vector<8x32xf32>
    %cst_182 = arith.constant 1.000000e+00 : f32
    %355 = vector.broadcast %cst_182 : f32 to vector<8x32xf32>
    %356 = arith.addf %355, %354 : vector<8x32xf32>
    %357 = arith.divf %355, %356 : vector<8x32xf32>
    %358 = vector.extract_strided_slice %345 {offsets = [0, 64], sizes = [8, 32], strides = [1, 1]} : vector<8x128xf32> to vector<8x32xf32>
    %359 = math.tanh %358 : vector<8x32xf32>
    %360 = vector.extract_strided_slice %345 {offsets = [0, 96], sizes = [8, 32], strides = [1, 1]} : vector<8x128xf32> to vector<8x32xf32>
    %361 = arith.negf %360 : vector<8x32xf32>
    %362 = math.exp %361 : vector<8x32xf32>
    %cst_183 = arith.constant 1.000000e+00 : f32
    %363 = vector.broadcast %cst_183 : f32 to vector<8x32xf32>
    %364 = arith.addf %363, %362 : vector<8x32xf32>
    %365 = arith.divf %363, %364 : vector<8x32xf32>
    %c0_184 = arith.constant 0 : index
    %c0_185 = arith.constant 0 : index
    %366 = vector.load %arg12[%c0_184, %c0_185] : memref<8x32xf32, #tpu.memory_space<vmem>>, vector<8x32xf32>
    %367 = arith.mulf %357, %366 : vector<8x32xf32>
    %368 = arith.mulf %351, %359 : vector<8x32xf32>
    %369 = arith.addf %367, %368 : vector<8x32xf32>
    %370 = math.tanh %369 : vector<8x32xf32>
    %371 = arith.mulf %365, %370 : vector<8x32xf32>
    %372 = vector.broadcast %339 : i32 to vector<8x1xi32>
    %373 = arith.cmpi slt, %372, %3 : vector<8x1xi32>
    %c0_186 = arith.constant 0 : index
    %c0_187 = arith.constant 0 : index
    %374 = vector.load %arg11[%c0_186, %c0_187] : memref<8x32xf32, #tpu.memory_space<vmem>>, vector<8x32xf32>
    %375 = vector.shape_cast %373 : vector<8x1xi1> to vector<8x1xi1>
    %376 = vector.broadcast %375 : vector<8x1xi1> to vector<8x32xi1>
    %377 = arith.select %376, %371, %374 : vector<8x32xi1>, vector<8x32xf32>
    %c0_188 = arith.constant 0 : index
    %c0_189 = arith.constant 0 : index
    %378 = vector.load %arg11[%c0_188, %c0_189] : memref<8x32xf32, #tpu.memory_space<vmem>>, vector<8x32xf32>
    tpu.vector_store %arg11[%c0_188, %c0_189], %377 {strides = array<i32>} : memref<8x32xf32, #tpu.memory_space<vmem>>, vector<8x32xf32>,
    %c0_190 = arith.constant 0 : index
    %c0_191 = arith.constant 0 : index
    %379 = vector.load %arg12[%c0_190, %c0_191] : memref<8x32xf32, #tpu.memory_space<vmem>>, vector<8x32xf32>
    %380 = vector.shape_cast %373 : vector<8x1xi1> to vector<8x1xi1>
    %381 = vector.broadcast %380 : vector<8x1xi1> to vector<8x32xi1>
    %382 = arith.select %381, %369, %379 : vector<8x32xi1>, vector<8x32xf32>
    %c0_192 = arith.constant 0 : index
    %c0_193 = arith.constant 0 : index
    %383 = vector.load %arg12[%c0_192, %c0_193] : memref<8x32xf32, #tpu.memory_space<vmem>>, vector<8x32xf32>
    tpu.vector_store %arg12[%c0_192, %c0_193], %382 {strides = array<i32>} : memref<8x32xf32, #tpu.memory_space<vmem>>, vector<8x32xf32>,
    %384 = arith.cmpi slt, %339, %4 : i32
    %cst_194 = arith.constant 0.000000e+00 : f32
    %cst_195 = arith.constant 0xFF800000 : f32
    %385 = arith.select %384, %cst_194, %cst_195 : f32
    %c0_196 = arith.constant 0 : index
    %c0_197 = arith.constant 0 : index
    %386 = vector.load %arg15[%c0_196, %c0_197] : memref<8x32xf32, #tpu.memory_space<vmem>>, vector<8x32xf32>
    %387 = vector.shape_cast %373 : vector<8x1xi1> to vector<8x1xi1>
    %388 = vector.broadcast %387 : vector<8x1xi1> to vector<8x32xi1>
    %389 = vector.broadcast %385 : f32 to vector<8x32xf32>
    %390 = arith.select %388, %371, %389 : vector<8x32xi1>, vector<8x32xf32>
    %391 = arith.maximumf %386, %390 : vector<8x32xf32>
    %c0_198 = arith.constant 0 : index
    %c0_199 = arith.constant 0 : index
    %392 = vector.load %arg15[%c0_198, %c0_199] : memref<8x32xf32, #tpu.memory_space<vmem>>, vector<8x32xf32>
    tpu.vector_store %arg15[%c0_198, %c0_199], %391 {strides = array<i32>} : memref<8x32xf32, #tpu.memory_space<vmem>>, vector<8x32xf32>,
    %c4_i32_200 = arith.constant 4 : i32
    %393 = arith.muli %arg0, %c4_i32_200 : i32
    %c3_i32_201 = arith.constant 3 : i32
    %394 = arith.addi %393, %c3_i32_201 : i32
    %c7_i32_202 = arith.constant 7 : i32
    %395 = arith.subi %c7_i32_202, %394 : i32
    %c0_203 = arith.constant 0 : index
    %c0_204 = arith.constant 0 : index
    %c0_205 = arith.constant 0 : index
    %396 = vector.load %arg2[%c0_203, %c0_204, %c0_205] : memref<4x8x128xf32, #tpu.memory_space<vmem>>, vector<1x8x128xf32>
    %397 = vector.shape_cast %396 : vector<1x8x128xf32> to vector<8x128xf32>
    %c0_206 = arith.constant 0 : index
    %c0_207 = arith.constant 0 : index
    %398 = vector.load %arg13[%c0_206, %c0_207] : memref<8x32xf32, #tpu.memory_space<vmem>>, vector<8x32xf32>
    %c0_208 = arith.constant 0 : index
    %c0_209 = arith.constant 0 : index
    %399 = vector.load %arg6[%c0_208, %c0_209] : memref<32x128xf32, #tpu.memory_space<vmem>>, vector<32x128xf32>
    %cst_210 = arith.constant dense<0.000000e+00> : vector<8x128xf32>
    %400 = tpu.matmul %398, %399, %cst_210 {dimension_numbers = #tpu.dot_dimension_numbers<[1], [0], [0], [1], [0, 0, 1, 1], [], []>} : vector<8x32xf32>, vector<32x128xf32>, vector<8x128xf32> -> vector<8x128xf32>
    %401 = arith.addf %397, %400 : vector<8x128xf32>
    %402 = vector.extract_strided_slice %401 {offsets = [0, 0], sizes = [8, 32], strides = [1, 1]} : vector<8x128xf32> to vector<8x32xf32>
    %403 = arith.negf %402 : vector<8x32xf32>
    %404 = math.exp %403 : vector<8x32xf32>
    %cst_211 = arith.constant 1.000000e+00 : f32
    %405 = vector.broadcast %cst_211 : f32 to vector<8x32xf32>
    %406 = arith.addf %405, %404 : vector<8x32xf32>
    %407 = arith.divf %405, %406 : vector<8x32xf32>
    %408 = vector.extract_strided_slice %401 {offsets = [0, 32], sizes = [8, 32], strides = [1, 1]} : vector<8x128xf32> to vector<8x32xf32>
    %409 = arith.negf %408 : vector<8x32xf32>
    %410 = math.exp %409 : vector<8x32xf32>
    %cst_212 = arith.constant 1.000000e+00 : f32
    %411 = vector.broadcast %cst_212 : f32 to vector<8x32xf32>
    %412 = arith.addf %411, %410 : vector<8x32xf32>
    %413 = arith.divf %411, %412 : vector<8x32xf32>
    %414 = vector.extract_strided_slice %401 {offsets = [0, 64], sizes = [8, 32], strides = [1, 1]} : vector<8x128xf32> to vector<8x32xf32>
    %415 = math.tanh %414 : vector<8x32xf32>
    %416 = vector.extract_strided_slice %401 {offsets = [0, 96], sizes = [8, 32], strides = [1, 1]} : vector<8x128xf32> to vector<8x32xf32>
    %417 = arith.negf %416 : vector<8x32xf32>
    %418 = math.exp %417 : vector<8x32xf32>
    %cst_213 = arith.constant 1.000000e+00 : f32
    %419 = vector.broadcast %cst_213 : f32 to vector<8x32xf32>
    %420 = arith.addf %419, %418 : vector<8x32xf32>
    %421 = arith.divf %419, %420 : vector<8x32xf32>
    %c0_214 = arith.constant 0 : index
    %c0_215 = arith.constant 0 : index
    %422 = vector.load %arg14[%c0_214, %c0_215] : memref<8x32xf32, #tpu.memory_space<vmem>>, vector<8x32xf32>
    %423 = arith.mulf %413, %422 : vector<8x32xf32>
    %424 = arith.mulf %407, %415 : vector<8x32xf32>
    %425 = arith.addf %423, %424 : vector<8x32xf32>
    %426 = math.tanh %425 : vector<8x32xf32>
    %427 = arith.mulf %421, %426 : vector<8x32xf32>
    %428 = vector.broadcast %395 : i32 to vector<8x1xi32>
    %429 = arith.cmpi slt, %428, %3 : vector<8x1xi32>
    %c0_216 = arith.constant 0 : index
    %c0_217 = arith.constant 0 : index
    %430 = vector.load %arg13[%c0_216, %c0_217] : memref<8x32xf32, #tpu.memory_space<vmem>>, vector<8x32xf32>
    %431 = vector.shape_cast %429 : vector<8x1xi1> to vector<8x1xi1>
    %432 = vector.broadcast %431 : vector<8x1xi1> to vector<8x32xi1>
    %433 = arith.select %432, %427, %430 : vector<8x32xi1>, vector<8x32xf32>
    %c0_218 = arith.constant 0 : index
    %c0_219 = arith.constant 0 : index
    %434 = vector.load %arg13[%c0_218, %c0_219] : memref<8x32xf32, #tpu.memory_space<vmem>>, vector<8x32xf32>
    tpu.vector_store %arg13[%c0_218, %c0_219], %433 {strides = array<i32>} : memref<8x32xf32, #tpu.memory_space<vmem>>, vector<8x32xf32>,
    %c0_220 = arith.constant 0 : index
    %c0_221 = arith.constant 0 : index
    %435 = vector.load %arg14[%c0_220, %c0_221] : memref<8x32xf32, #tpu.memory_space<vmem>>, vector<8x32xf32>
    %436 = vector.shape_cast %429 : vector<8x1xi1> to vector<8x1xi1>
    %437 = vector.broadcast %436 : vector<8x1xi1> to vector<8x32xi1>
    %438 = arith.select %437, %425, %435 : vector<8x32xi1>, vector<8x32xf32>
    %c0_222 = arith.constant 0 : index
    %c0_223 = arith.constant 0 : index
    %439 = vector.load %arg14[%c0_222, %c0_223] : memref<8x32xf32, #tpu.memory_space<vmem>>, vector<8x32xf32>
    tpu.vector_store %arg14[%c0_222, %c0_223], %438 {strides = array<i32>} : memref<8x32xf32, #tpu.memory_space<vmem>>, vector<8x32xf32>,
    %440 = arith.cmpi slt, %395, %4 : i32
    %cst_224 = arith.constant 0.000000e+00 : f32
    %cst_225 = arith.constant 0xFF800000 : f32
    %441 = arith.select %440, %cst_224, %cst_225 : f32
    %c0_226 = arith.constant 0 : index
    %c0_227 = arith.constant 0 : index
    %442 = vector.load %arg16[%c0_226, %c0_227] : memref<8x32xf32, #tpu.memory_space<vmem>>, vector<8x32xf32>
    %443 = vector.shape_cast %429 : vector<8x1xi1> to vector<8x1xi1>
    %444 = vector.broadcast %443 : vector<8x1xi1> to vector<8x32xi1>
    %445 = vector.broadcast %441 : f32 to vector<8x32xf32>
    %446 = arith.select %444, %427, %445 : vector<8x32xi1>, vector<8x32xf32>
    %447 = arith.maximumf %442, %446 : vector<8x32xf32>
    %c0_228 = arith.constant 0 : index
    %c0_229 = arith.constant 0 : index
    %448 = vector.load %arg16[%c0_228, %c0_229] : memref<8x32xf32, #tpu.memory_space<vmem>>, vector<8x32xf32>
    tpu.vector_store %arg16[%c0_228, %c0_229], %447 {strides = array<i32>} : memref<8x32xf32, #tpu.memory_space<vmem>>, vector<8x32xf32>,
    %c1_i32_230 = arith.constant 1 : i32
    %449 = arith.cmpi eq, %arg0, %c1_i32_230 : i32
    %450 = arith.extui %449 : i1 to i32
    %c0_i32_231 = arith.constant 0 : i32
    %451 = arith.cmpi ne, %450, %c0_i32_231 : i32
    scf.if %451 {
      %c0_232 = arith.constant 0 : index
      %c0_233 = arith.constant 0 : index
      %452 = vector.load %arg15[%c0_232, %c0_233] : memref<8x32xf32, #tpu.memory_space<vmem>>, vector<8x32xf32>
      %c0_234 = arith.constant 0 : index
      %c0_235 = arith.constant 0 : index
      %453 = vector.load %arg7[%c0_234, %c0_235] : memref<32x5xf32, #tpu.memory_space<vmem>>, vector<32x5xf32>
      %cst_236 = arith.constant dense<0.000000e+00> : vector<8x5xf32>
      %454 = tpu.matmul %452, %453, %cst_236 {dimension_numbers = #tpu.dot_dimension_numbers<[1], [0], [0], [1], [0, 0, 1, 1], [], []>} : vector<8x32xf32>, vector<32x5xf32>, vector<8x5xf32> -> vector<8x5xf32>
      %c0_237 = arith.constant 0 : index
      %c0_238 = arith.constant 0 : index
      %455 = vector.load %arg16[%c0_237, %c0_238] : memref<8x32xf32, #tpu.memory_space<vmem>>, vector<8x32xf32>
      %c0_239 = arith.constant 0 : index
      %c0_240 = arith.constant 0 : index
      %456 = vector.load %arg8[%c0_239, %c0_240] : memref<32x5xf32, #tpu.memory_space<vmem>>, vector<32x5xf32>
      %cst_241 = arith.constant dense<0.000000e+00> : vector<8x5xf32>
      %457 = tpu.matmul %455, %456, %cst_241 {dimension_numbers = #tpu.dot_dimension_numbers<[1], [0], [0], [1], [0, 0, 1, 1], [], []>} : vector<8x32xf32>, vector<32x5xf32>, vector<8x5xf32> -> vector<8x5xf32>
      %458 = arith.addf %454, %457 : vector<8x5xf32>
      %c0_242 = arith.constant 0 : index
      %c0_243 = arith.constant 0 : index
      %459 = vector.load %arg9[%c0_242, %c0_243] : memref<1x5xf32, #tpu.memory_space<vmem>>, vector<1x5xf32>
      %460 = vector.broadcast %459 : vector<1x5xf32> to vector<8x5xf32>
      %461 = arith.addf %458, %460 : vector<8x5xf32>
      %c0_244 = arith.constant 0 : index
      %c0_245 = arith.constant 0 : index
      %462 = vector.load %arg10[%c0_244, %c0_245] : memref<8x5xf32, #tpu.memory_space<vmem>>, vector<8x5xf32>
      tpu.vector_store %arg10[%c0_244, %c0_245], %461 {strides = array<i32>} : memref<8x5xf32, #tpu.memory_space<vmem>>, vector<8x5xf32>,
    } else {
    }
    return
  }
  func.func @transform_0(%arg0: i32) -> (i32, i32, i32) {
    %c0_i32 = arith.constant 0 : i32
    %c0_i32_0 = arith.constant 0 : i32
    %c0_i32_1 = arith.constant 0 : i32
    return %arg0, %c0_i32, %c0_i32_0 : i32, i32, i32
  }
  func.func @transform_1(%arg0: i32) -> (i32, i32, i32) {
    %c1_i32 = arith.constant 1 : i32
    %0 = arith.subi %c1_i32, %arg0 : i32
    %c0_i32 = arith.constant 0 : i32
    %c0_i32_0 = arith.constant 0 : i32
    %c0_i32_1 = arith.constant 0 : i32
    return %0, %c0_i32, %c0_i32_0 : i32, i32, i32
  }
  func.func @transform_2(%arg0: i32) -> (i32, i32) {
    %c0_i32 = arith.constant 0 : i32
    %c0_i32_0 = arith.constant 0 : i32
    %c0_i32_1 = arith.constant 0 : i32
    return %c0_i32, %c0_i32_0 : i32, i32
  }
  func.func @transform_3(%arg0: i32) -> i32 {
    %c0_i32 = arith.constant 0 : i32
    %c0_i32_0 = arith.constant 0 : i32
    return %c0_i32 : i32
  }
  func.func @transform_4(%arg0: i32) -> (i32, i32) {
    %c0_i32 = arith.constant 0 : i32
    %c0_i32_0 = arith.constant 0 : i32
    %c0_i32_1 = arith.constant 0 : i32
    return %c0_i32, %c0_i32_0 : i32, i32
  }
  func.func @transform_5(%arg0: i32) -> (i32, i32) {
    %c0_i32 = arith.constant 0 : i32
    %c0_i32_0 = arith.constant 0 : i32
    %c0_i32_1 = arith.constant 0 : i32
    return %c0_i32, %c0_i32_0 : i32, i32
  }
  func.func @transform_6(%arg0: i32) -> (i32, i32) {
    %c0_i32 = arith.constant 0 : i32
    %c0_i32_0 = arith.constant 0 : i32
    %c0_i32_1 = arith.constant 0 : i32
    return %c0_i32, %c0_i32_0 : i32, i32
  }
  func.func @transform_7(%arg0: i32) -> (i32, i32) {
    %c0_i32 = arith.constant 0 : i32
    %c0_i32_0 = arith.constant 0 : i32
    %c0_i32_1 = arith.constant 0 : i32
    return %c0_i32, %c0_i32_0 : i32, i32
  }
  func.func @transform_8(%arg0: i32) -> (i32, i32) {
    %c0_i32 = arith.constant 0 : i32
    %c0_i32_0 = arith.constant 0 : i32
    %c0_i32_1 = arith.constant 0 : i32
    return %c0_i32, %c0_i32_0 : i32, i32
  }
  func.func @transform_9(%arg0: i32) -> (i32, i32) {
    %c0_i32 = arith.constant 0 : i32
    %c0_i32_0 = arith.constant 0 : i32
    %c0_i32_1 = arith.constant 0 : i32
    return %c0_i32, %c0_i32_0 : i32, i32
  }
}

</mosaic_0001>

<llo_original>
// kernel: lstm_model_forward.1
$region0: #{lstm_model_forward.1}
  #allocation0 [shape = 'u32[]', space=smem, size = 0x4, offset = 0x4, fixed_abs, tag = 'smem constant byte address 0x4 - core index']
  #allocation1 [shape = 'u32[72,128]{1,0:T(1,128)}', space=vmem, size = 0x9000, scoped, tag = 'internal scratch']
  #allocation2 [shape = 'f32[8,32]{1,0:T(8,128)}', space=vmem, size = 0x1000, scoped, tag = 'scratch operand']
  #allocation3 [shape = 'f32[8,32]{1,0:T(8,128)}', space=vmem, size = 0x1000, scoped, tag = 'scratch operand']
  #allocation4 [shape = 'f32[8,32]{1,0:T(8,128)}', space=vmem, size = 0x1000, scoped, tag = 'scratch operand']
  #allocation5 [shape = 'f32[8,32]{1,0:T(8,128)}', space=vmem, size = 0x1000, scoped, tag = 'scratch operand']
  #allocation6 [shape = 'f32[8,32]{1,0:T(8,128)}', space=vmem, size = 0x1000, scoped, tag = 'scratch operand']
  #allocation7 [shape = 'f32[8,32]{1,0:T(8,128)}', space=vmem, size = 0x1000, scoped, tag = 'scratch operand']
  #allocation8 [shape = 's32[1]{0:T(128)S(6)}', space=smem, size = 0x200, scoped, tag = 'scoped memory for lstm_model_forward.1']
  %s0 = inlined_call_operand.vmem [shape: f32[8,8,128], index: 0, kind: input, shape index: {}]
  %s1 = inlined_call_operand.vmem [shape: f32[8,8,128], index: 1, kind: input, shape index: {}]
  %s2 = inlined_call_operand.vmem [shape: s32[8,1], index: 2, kind: input, shape index: {}]
  %s3 = inlined_call_operand.<no memory space> [shape: s32[1], index: 3, kind: input, shape index: {}]
  %s4 = inlined_call_operand.vmem [shape: f32[32,128], index: 4, kind: input, shape index: {}]
  %s5 = inlined_call_operand.vmem [shape: f32[32,128], index: 5, kind: input, shape index: {}]
  %s6 = inlined_call_operand.vmem [shape: f32[32,5], index: 6, kind: input, shape index: {}]
  %s7 = inlined_call_operand.vmem [shape: f32[32,5], index: 7, kind: input, shape index: {}]
  %s8 = inlined_call_operand.vmem [shape: f32[1,5], index: 8, kind: input, shape index: {}]
  %s9 = inlined_call_operand.vmem [shape: f32[8,5], index: 9, kind: output, shape index: {}]
  %s10 = sld [smem:[#allocation0]]
  $region77: #{lstm_model_forward.1} parent=0
    _
  %s12 = ssub.s32 1, %s10
  %s13 = scalar_select 0, %s12, %s10
  %14 = sst [smem:[#allocation8]] %s3
  loop: start=0, step=1, limit=4
  $region2: #{lstm_model_forward.1} parent=0 // loop_pre_header
    _
  $region3: #{lstm_model_forward.1} parent=0 // loop_header
    %s16 = sphi 0, %s20
    %p17 = scmp.ge.s32.totalorder %s16, 4
    %s26 = sphi 0, %s28
    %s29 = sphi 0, %s26
    %s30 = sphi 0, %s29
    %s46 = sphi 0, %s30
    %s54 = sphi 0, %s56
    %s57 = sphi 0, %s54
    %s58 = sphi 0, %s57
    %s74 = sphi 0, %s58
    %s78 = sphi 0, %s78
    %s80 = sphi 0, %s78
    %s81 = sphi 0, %s80
    %s95 = sphi 0, %s81
    %s99 = sphi 0, %s99
    %s101 = sphi 0, %s99
    %s102 = sphi 0, %s101
    %s116 = sphi 0, %s102
    %s120 = sphi 0, %s120
    %s122 = sphi 0, %s120
    %s123 = sphi 0, %s122
    %s137 = sphi 0, %s123
    %s141 = sphi 0, %s141
    %s143 = sphi 0, %s141
    %s144 = sphi 0, %s143
    %s158 = sphi 0, %s144
    %s162 = sphi 0, %s162
    %s164 = sphi 0, %s162
    %s165 = sphi 0, %s164
    %s179 = sphi 0, %s165
    %s183 = sphi 0, %s183
    %s185 = sphi 0, %s183
    %s186 = sphi 0, %s185
    %s200 = sphi 0, %s186
    %s204 = sphi 0, %s204
    %s206 = sphi 0, %s204
    %s207 = sphi 0, %s206
    %s221 = sphi 0, %s207
    %s225 = sphi 0, %s225
    %s227 = sphi 0, %s225
    %s228 = sphi 0, %s227
    %s242 = sphi 0, %s228
  $region4: #{lstm_model_forward.1} parent=0 // loop_header_branch
    %19 = sbr.rel (%p17) target = $region8
  $region5: #{lstm_model_forward.1} parent=0 // loop_body
    %s21 = ssub.s32 %s16, 1
    %s22 = ssub.s32 %s16, 2
    %s23 = sadd.s32 %s16, 1
    %s24 = ssub.s32 %s16, %s23
    %p25 = scmp.eq.s32.totalorder %s24, 0
    %s27 = sadd.s32 %s26, 1
    %s28 = scalar_select %p25, %s26, %s27
    %p31 = pneg %p25
    %p32 = scmp.eq.s32.totalorder %s16, 1
    %p33 = por %p31, %p32
    %p34 = scmp.ne.s32.totalorder %s26, %s29
    %p35 = scmp.eq.s32.totalorder %s16, 0
    %p36 = por %p34, %p35
    %p37 = scmp.ne.s32.totalorder %s26, %s29
    %p38 = scmp.eq.s32.totalorder %s21, 1
    %p39 = por %p37, %p38
    %p40 = scmp.ne.s32.totalorder %s29, %s30
    %p41 = scmp.eq.s32.totalorder %s21, 0
    %p42 = por %p40, %p41
    %p43 = scmp.ne.s32.totalorder %s29, %s30
    %p44 = scmp.eq.s32.totalorder %s22, 1
    %p45 = por %p43, %p44
    %p47 = scmp.ne.s32.totalorder %s30, %s46
    %p48 = scmp.eq.s32.totalorder %s22, 0
    %p49 = por %p47, %p48
    %s50 = ssub.s32 1, %s16
    %s51 = ssub.s32 1, %s23
    %s52 = ssub.s32 %s50, %s51
    %p53 = scmp.eq.s32.totalorder %s52, 0
    %s55 = sadd.s32 %s54, 1
    %s56 = scalar_select %p53, %s54, %s55
    %p59 = pneg %p53
    %p60 = scmp.eq.s32.totalorder %s16, 1
    %p61 = por %p59, %p60
    %p62 = scmp.ne.s32.totalorder %s54, %s57
    %p63 = scmp.eq.s32.totalorder %s16, 0
    %p64 = por %p62, %p63
    %p65 = scmp.ne.s32.totalorder %s54, %s57
    %p66 = scmp.eq.s32.totalorder %s21, 1
    %p67 = por %p65, %p66
    %p68 = scmp.ne.s32.totalorder %s57, %s58
    %p69 = scmp.eq.s32.totalorder %s21, 0
    %p70 = por %p68, %p69
    %p71 = scmp.ne.s32.totalorder %s57, %s58
    %p72 = scmp.eq.s32.totalorder %s22, 1
    %p73 = por %p71, %p72
    %p75 = scmp.ne.s32.totalorder %s58, %s74
    %p76 = scmp.eq.s32.totalorder %s22, 0
    %p77 = por %p75, %p76
    %s79 = sadd.s32 %s78, 1
    %p82 = scmp.eq.s32.totalorder %s16, 1
    %p83 = scmp.ne.s32.totalorder %s78, %s80
    %p84 = scmp.eq.s32.totalorder %s16, 0
    %p85 = por %p83, %p84
    %p86 = scmp.ne.s32.totalorder %s78, %s80
    %p87 = scmp.eq.s32.totalorder %s21, 1
    %p88 = por %p86, %p87
    %p89 = scmp.ne.s32.totalorder %s80, %s81
    %p90 = scmp.eq.s32.totalorder %s21, 0
    %p91 = por %p89, %p90
    %p92 = scmp.ne.s32.totalorder %s80, %s81
    %p93 = scmp.eq.s32.totalorder %s22, 1
    %p94 = por %p92, %p93
    %p96 = scmp.ne.s32.totalorder %s81, %s95
    %p97 = scmp.eq.s32.totalorder %s22, 0
    %p98 = por %p96, %p97
    %s100 = sadd.s32 %s99, 1
    %p103 = scmp.eq.s32.totalorder %s16, 1
    %p104 = scmp.ne.s32.totalorder %s99, %s101
    %p105 = scmp.eq.s32.totalorder %s16, 0
    %p106 = por %p104, %p105
    %p107 = scmp.ne.s32.totalorder %s99, %s101
    %p108 = scmp.eq.s32.totalorder %s21, 1
    %p109 = por %p107, %p108
    %p110 = scmp.ne.s32.totalorder %s101, %s102
    %p111 = scmp.eq.s32.totalorder %s21, 0
    %p112 = por %p110, %p111
    %p113 = scmp.ne.s32.totalorder %s101, %s102
    %p114 = scmp.eq.s32.totalorder %s22, 1
    %p115 = por %p113, %p114
    %p117 = scmp.ne.s32.totalorder %s102, %s116
    %p118 = scmp.eq.s32.totalorder %s22, 0
    %p119 = por %p117, %p118
    %s121 = sadd.s32 %s120, 1
    %p124 = scmp.eq.s32.totalorder %s16, 1
    %p125 = scmp.ne.s32.totalorder %s120, %s122
    %p126 = scmp.eq.s32.totalorder %s16, 0
    %p127 = por %p125, %p126
    %p128 = scmp.ne.s32.totalorder %s120, %s122
    %p129 = scmp.eq.s32.totalorder %s21, 1
    %p130 = por %p128, %p129
    %p131 = scmp.ne.s32.totalorder %s122, %s123
    %p132 = scmp.eq.s32.totalorder %s21, 0
    %p133 = por %p131, %p132
    %p134 = scmp.ne.s32.totalorder %s122, %s123
    %p135 = scmp.eq.s32.totalorder %s22, 1
    %p136 = por %p134, %p135
    %p138 = scmp.ne.s32.totalorder %s123, %s137
    %p139 = scmp.eq.s32.totalorder %s22, 0
    %p140 = por %p138, %p139
    %s142 = sadd.s32 %s141, 1
    %p145 = scmp.eq.s32.totalorder %s16, 1
    %p146 = scmp.ne.s32.totalorder %s141, %s143
    %p147 = scmp.eq.s32.totalorder %s16, 0
    %p148 = por %p146, %p147
    %p149 = scmp.ne.s32.totalorder %s141, %s143
    %p150 = scmp.eq.s32.totalorder %s21, 1
    %p151 = por %p149, %p150
    %p152 = scmp.ne.s32.totalorder %s143, %s144
    %p153 = scmp.eq.s32.totalorder %s21, 0
    %p154 = por %p152, %p153
    %p155 = scmp.ne.s32.totalorder %s143, %s144
    %p156 = scmp.eq.s32.totalorder %s22, 1
    %p157 = por %p155, %p156
    %p159 = scmp.ne.s32.totalorder %s144, %s158
    %p160 = scmp.eq.s32.totalorder %s22, 0
    %p161 = por %p159, %p160
    %s163 = sadd.s32 %s162, 1
    %p166 = scmp.eq.s32.totalorder %s16, 1
    %p167 = scmp.ne.s32.totalorder %s162, %s164
    %p168 = scmp.eq.s32.totalorder %s16, 0
    %p169 = por %p167, %p168
    %p170 = scmp.ne.s32.totalorder %s162, %s164
    %p171 = scmp.eq.s32.totalorder %s21, 1
    %p172 = por %p170, %p171
    %p173 = scmp.ne.s32.totalorder %s164, %s165
    %p174 = scmp.eq.s32.totalorder %s21, 0
    %p175 = por %p173, %p174
    %p176 = scmp.ne.s32.totalorder %s164, %s165
    %p177 = scmp.eq.s32.totalorder %s22, 1
    %p178 = por %p176, %p177
    %p180 = scmp.ne.s32.totalorder %s165, %s179
    %p181 = scmp.eq.s32.totalorder %s22, 0
    %p182 = por %p180, %p181
    %s184 = sadd.s32 %s183, 1
    %p187 = scmp.eq.s32.totalorder %s16, 1
    %p188 = scmp.ne.s32.totalorder %s183, %s185
    %p189 = scmp.eq.s32.totalorder %s16, 0
    %p190 = por %p188, %p189
    %p191 = scmp.ne.s32.totalorder %s183, %s185
    %p192 = scmp.eq.s32.totalorder %s21, 1
    %p193 = por %p191, %p192
    %p194 = scmp.ne.s32.totalorder %s185, %s186
    %p195 = scmp.eq.s32.totalorder %s21, 0
    %p196 = por %p194, %p195
    %p197 = scmp.ne.s32.totalorder %s185, %s186
    %p198 = scmp.eq.s32.totalorder %s22, 1
    %p199 = por %p197, %p198
    %p201 = scmp.ne.s32.totalorder %s186, %s200
    %p202 = scmp.eq.s32.totalorder %s22, 0
    %p203 = por %p201, %p202
    %s205 = sadd.s32 %s204, 1
    %p208 = scmp.eq.s32.totalorder %s16, 1
    %p209 = scmp.ne.s32.totalorder %s204, %s206
    %p210 = scmp.eq.s32.totalorder %s16, 0
    %p211 = por %p209, %p210
    %p212 = scmp.ne.s32.totalorder %s204, %s206
    %p213 = scmp.eq.s32.totalorder %s21, 1
    %p214 = por %p212, %p213
    %p215 = scmp.ne.s32.totalorder %s206, %s207
    %p216 = scmp.eq.s32.totalorder %s21, 0
    %p217 = por %p215, %p216
    %p218 = scmp.ne.s32.totalorder %s206, %s207
    %p219 = scmp.eq.s32.totalorder %s22, 1
    %p220 = por %p218, %p219
    %p222 = scmp.ne.s32.totalorder %s207, %s221
    %p223 = scmp.eq.s32.totalorder %s22, 0
    %p224 = por %p222, %p223
    %s226 = sadd.s32 %s225, 1
    %p229 = scmp.eq.s32.totalorder %s16, 1
    %p230 = scmp.ne.s32.totalorder %s225, %s227
    %p231 = scmp.eq.s32.totalorder %s16, 0
    %p232 = por %p230, %p231
    %p233 = scmp.ne.s32.totalorder %s225, %s227
    %p234 = scmp.eq.s32.totalorder %s21, 1
    %p235 = por %p233, %p234
    %p236 = scmp.ne.s32.totalorder %s227, %s228
    %p237 = scmp.eq.s32.totalorder %s21, 0
    %p238 = por %p236, %p237
    %p239 = scmp.ne.s32.totalorder %s227, %s228
    %p240 = scmp.eq.s32.totalorder %s22, 1
    %p241 = por %p239, %p240
    %p243 = scmp.ne.s32.totalorder %s228, %s242
    %p244 = scmp.eq.s32.totalorder %s22, 0
    %p245 = por %p243, %p244
    %p246 = scmp.le.s32.totalorder 1, %s16
    %p247 = scmp.lt.s32.totalorder %s16, 3
    %p248 = pnand %p246, %p247
    %p249 = pneg %p248
    // Predicated region
    $region9: #{lstm_model_forward.1} parent=5 // pred_check
      _
    $region10: #{lstm_model_forward.1} parent=5 // pred_check_branch
      %251 = sbr.rel (%p248) target = $region12
    $region11: #{lstm_model_forward.1} parent=5 // pred_region
      %s252 = ssub.s32 %s16, 1
      // Predicated region
      $region13: #{lstm_model_forward.1} parent=11 // pred_check
        %p253 = pneg %p91
      $region14: #{lstm_model_forward.1} parent=11 // pred_check_branch
        %255 = sbr.rel (%p253) target = $region16
      $region15: #{lstm_model_forward.1} parent=11 // pred_region
        _
      $region16: #{lstm_model_forward.1} parent=11 // pred_fallthru
        _
      // Predicated region
      $region17: #{lstm_model_forward.1} parent=11 // pred_check
        %p256 = pneg %p112
      $region18: #{lstm_model_forward.1} parent=11 // pred_check_branch
        %258 = sbr.rel (%p256) target = $region20
      $region19: #{lstm_model_forward.1} parent=11 // pred_region
        _
      $region20: #{lstm_model_forward.1} parent=11 // pred_fallthru
        _
      // Predicated region
      $region21: #{lstm_model_forward.1} parent=11 // pred_check
        %p259 = pneg %p133
      $region22: #{lstm_model_forward.1} parent=11 // pred_check_branch
        %261 = sbr.rel (%p259) target = $region24
      $region23: #{lstm_model_forward.1} parent=11 // pred_region
        _
      $region24: #{lstm_model_forward.1} parent=11 // pred_fallthru
        _
      // Predicated region
      $region25: #{lstm_model_forward.1} parent=11 // pred_check
        %p262 = pneg %p154
      $region26: #{lstm_model_forward.1} parent=11 // pred_check_branch
        %264 = sbr.rel (%p262) target = $region28
      $region27: #{lstm_model_forward.1} parent=11 // pred_region
        _
      $region28: #{lstm_model_forward.1} parent=11 // pred_fallthru
        _
      // Predicated region
      $region29: #{lstm_model_forward.1} parent=11 // pred_check
        %p265 = pneg %p175
      $region30: #{lstm_model_forward.1} parent=11 // pred_check_branch
        %267 = sbr.rel (%p265) target = $region32
      $region31: #{lstm_model_forward.1} parent=11 // pred_region
        _
      $region32: #{lstm_model_forward.1} parent=11 // pred_fallthru
        _
      // Predicated region
      $region33: #{lstm_model_forward.1} parent=11 // pred_check
        %p268 = pneg %p196
      $region34: #{lstm_model_forward.1} parent=11 // pred_check_branch
        %270 = sbr.rel (%p268) target = $region36
      $region35: #{lstm_model_forward.1} parent=11 // pred_region
        _
      $region36: #{lstm_model_forward.1} parent=11 // pred_fallthru
        _
      // Predicated region
      $region37: #{lstm_model_forward.1} parent=11 // pred_check
        %p271 = pneg %p217
      $region38: #{lstm_model_forward.1} parent=11 // pred_check_branch
        %273 = sbr.rel (%p271) target = $region40
      $region39: #{lstm_model_forward.1} parent=11 // pred_region
        _
      $region40: #{lstm_model_forward.1} parent=11 // pred_fallthru
        _
    $region12: #{lstm_model_forward.1} parent=5 // pred_fallthru
      _
    %p274 = scmp.lt.s32.totalorder %s16, 2
    // Predicated region
    $region41: #{lstm_model_forward.1} parent=5 // pred_check
      %p275 = pneg %p274
    $region42: #{lstm_model_forward.1} parent=5 // pred_check_branch
      %277 = sbr.rel (%p275) target = $region44
    $region43: #{lstm_model_forward.1} parent=5 // pred_region
      // Predicated region
      $region45: #{lstm_model_forward.1} parent=43 // pred_check
        %p278 = pneg %p36
      $region46: #{lstm_model_forward.1} parent=43 // pred_check_branch
        %280 = sbr.rel (%p278) target = $region48
      $region47: #{lstm_model_forward.1} parent=43 // pred_region
        %s281 = smul.u32 4, %s16
        %p282 = scmp.lt.s32.totalorder %s281, 7
        %s283 = scalar_select %p282, %s281, 7
        %s284 = smul.addr %s283, 8
        %s285 = scalar_lea.vmem %s0, %s284
        %s286 = smul.u32 4, %s16
      $region48: #{lstm_model_forward.1} parent=43 // pred_fallthru
        _
      // Predicated region
      $region49: #{lstm_model_forward.1} parent=43 // pred_check
        %p287 = pneg %p64
      $region50: #{lstm_model_forward.1} parent=43 // pred_check_branch
        %289 = sbr.rel (%p287) target = $region52
      $region51: #{lstm_model_forward.1} parent=43 // pred_region
        %s290 = ssub.s32 1, %s16
        %s291 = smul.u32 4, %s290
        %p292 = scmp.lt.s32.totalorder %s291, 7
        %s293 = scalar_select %p292, %s291, 7
        %s294 = smul.addr %s293, 8
        %s295 = scalar_lea.vmem %s1, %s294
        %s296 = ssub.s32 1, %s16
        %s297 = smul.u32 4, %s296
      $region52: #{lstm_model_forward.1} parent=43 // pred_fallthru
        _
    $region44: #{lstm_model_forward.1} parent=5 // pred_fallthru
      _
    %p298 = scmp.le.s32.totalorder 1, %s16
    %p299 = scmp.lt.s32.totalorder %s16, 3
    %p300 = pnand %p298, %p299
    %p301 = pneg %p300
    // Predicated region
    $region53: #{lstm_model_forward.1} parent=5 // pred_check
      _
    $region54: #{lstm_model_forward.1} parent=5 // pred_check_branch
      %303 = sbr.rel (%p300) target = $region56
    $region55: #{lstm_model_forward.1} parent=5 // pred_region
      %s304 = ssub.s32 %s16, 1
      %s305 = smul.u32 4, %s21
      %p306 = scmp.lt.s32.totalorder %s305, 7
      %s307 = scalar_select %p306, %s305, 7
      %s308 = smul.addr %s307, 8
      %s309 = scalar_lea.vmem %s0, %s308
      %p310 = pneg %p42
      %p311 = pneg %p39
      %s312 = ssub.s32 1, %s21
      %s313 = smul.u32 4, %s312
      %p314 = scmp.lt.s32.totalorder %s313, 7
      %s315 = scalar_select %p314, %s313, 7
      %s316 = smul.addr %s315, 8
      %s317 = scalar_lea.vmem %s1, %s316
      %p318 = pneg %p70
      %p319 = pneg %p67
      %p320 = pneg %p91
      %p321 = pneg %p88
      %p322 = pneg %p112
      %p323 = pneg %p109
      %p324 = pneg %p133
      %p325 = pneg %p130
      %p326 = pneg %p154
      %p327 = pneg %p151
      %p328 = pneg %p175
      %p329 = pneg %p172
      %p330 = pneg %p196
      %p331 = pneg %p193
      %p332 = pneg %p217
      %p333 = pneg %p214
      %p334 = pneg %p238
      %p335 = pneg %p235
      %s336 = smul.u32 4, %s21
      %p337 = scmp.lt.s32.totalorder %s336, 7
      %s338 = scalar_select %p337, %s336, 7
      %s339 = smul.addr %s338, 8
      %s340 = scalar_lea.vmem %s0, %s339
      %s341 = smul.u32 4, %s21
      %s342 = ssub.s32 1, %s21
      %s343 = smul.u32 4, %s342
      %p344 = scmp.lt.s32.totalorder %s343, 7
      %s345 = scalar_select %p344, %s343, 7
      %s346 = smul.addr %s345, 8
      %s347 = scalar_lea.vmem %s1, %s346
      %s348 = ssub.s32 1, %s21
      %s349 = smul.u32 4, %s348
      %p350 = scmp.eq.s32.totalorder %s21, 0
      // Predicated region
      $region57: #{lstm_model_forward.1} parent=55 // pred_check
        %p351 = pneg %p350
      $region58: #{lstm_model_forward.1} parent=55 // pred_check_branch
        %353 = sbr.rel (%p351) target = $region60
      $region59: #{lstm_model_forward.1} parent=55 // pred_region
        %vm354 = vcmask 261120
        %355 = vst.msk [vmem:[#allocation2] sm:$0xff] %vm354, 0.0
        %356 = vst.msk [vmem:[#allocation3] sm:$0xff] %vm354, 0.0
        %357 = vst.msk [vmem:[#allocation4] sm:$0xff] %vm354, 0.0
        %358 = vst.msk [vmem:[#allocation5] sm:$0xff] %vm354, 0.0
        %359 = vst.msk [vmem:[#allocation6] sm:$0xff] %vm354, -inf
        %360 = vst.msk [vmem:[#allocation7] sm:$0xff] %vm354, -inf
      $region60: #{lstm_model_forward.1} parent=55 // pred_fallthru
        _
      %v361 = vld [vmem:[%s2] sm:$0xff]
      %s362 = sld [smem:[#allocation8]]
      %s363 = smul.u32 %s21, 4
      %v364 = vld [vmem:[%s340] sm:$0xff]
      %v365 = vld [vmem:[#allocation2] sm:$0xff]
      %v366 = vld [vmem:[%s4] sm:$0xff]
      %v367 = vld [vmem:[%s4 + $0x8] sm:$0xff]
      %v368 = vld [vmem:[%s4 + $0x10] sm:$0xff]
      %v369 = vld [vmem:[%s4 + $0x18] sm:$0xff]
      %vm370 = vcmask 261120
      %v372 = vsel %vm370, %v365, 0
      %374 = vmatpush.msra.mxu0 0.0
      %375 = vmatpush.msra.mxu0 0.0
      %376 = vmatpush.msra.mxu0 0.0
      %377 = vmatpush.msra.mxu0 0.0
      %378 = vmatpush.msra.mxu0 0.0
      %379 = vmatpush.msra.mxu0 0.0
      %380 = vmatpush.msra.mxu0 0.0
      %381 = vmatpush.msra.mxu0 0.0
      %382 = vmatpush.msra.mxu0 0.0
      %383 = vmatpush.msra.mxu0 0.0
      %384 = vmatpush.msra.mxu0 0.0
      %385 = vmatpush.msra.mxu0 0.0
      %386 = vmatpush.msra.mxu0 %v369
      %387 = vmatpush.msra.mxu0 %v368
      %388 = vmatpush.msra.mxu0 %v367
      %389 = vmatpush.msra.mxu0 %v366
      %390 = vmatmul.f32.gmra.mxu0 %v372
      %v391 = vpop.f32.mrf.mxu0
      %v392 = vadd.f32 0.0, %v391
      %393 = vdwg.mxu0
      %v394 = vadd.f32 %v364, %v392
      %v395 = vxor.u32 %v394, 2147483648
      %v396 = vmul.f32 %v395, 1.442695
      %v397 = vpow.pop %v396
      %v398 = vadd.f32 %v397, 1.0
      %v399 = vrcp.pop %v398
      %v400 = vmul.f32 %v398, %v399
      %v401 = vsub.f32 1.0, %v400
      %v402 = vmul.f32 %v399, %v401
      %v403 = vadd.f32 %v399, %v402
      %vm404 = vweird.f32 %v398
      %vm405 = vweird.f32 %v399
      %vm406 = vmor %vm404, %vm405
      %v407 = vsel %vm406, %v399, %v403
      %v408 = vand.u32 2147483647, %v398
      %vm409 = vcmp.eq.f32.partialorder %v408, 8.507059e+37
      %v410 = vand.u32 %v398, 2147483648
      %v411 = vor.u32 1.1754944e-38, %v410
      %v412 = vsel %vm409, %v411, %v407
      %v413 = vmul.f32 1.0, %v412
      %v414 = vtanh.pop %v394
      %v415 = vld [vmem:[#allocation3] sm:$0xff]
      %417 = vrot.lane.b32.xlu0 %v415, 32
      %v418 = vpop.permute.xlu0 %417
      %v420 = vmul.f32 %v413, %v418
      %422 = vrot.lane.b32.xlu0 %v414, 64
      %v423 = vpop.permute.xlu0 %422
      %v425 = vmul.f32 %v413, %v423
      %427 = vrot.lane.b32.xlu0 %v425, 32
      %v428 = vpop.permute.xlu0 %427
      %v430 = vadd.f32 %v420, %v428
      %v431 = vtanh.pop %v430
      %433 = vrot.lane.b32.xlu0 %v431, 64
      %v434 = vpop.permute.xlu0 %433
      %v436 = vmul.f32 %v413, %v434
      %v437 = vstv %s363
      %vm438 = vcmp.lt.s32.totalorder %v437, %v361
      %v439 = vsel %vm438, 1, 0
      %440 = vset.pattern.permute.xlu0 0
      %441 = vperm.xlu0 %440, %v439
      %v442 = vpop.permute.xlu0 %441
      %vm443 = vcmp.eq.s32.totalorder %v442, 1
      %444 = vrot.lane.b32.xlu0 %v365, 96
      %v445 = vpop.permute.xlu0 %444
      %v447 = vsel %vm443, %v436, %v445
      %449 = vrot.lane.b32.xlu0 %v447, 32
      %v450 = vpop.permute.xlu0 %449
      %452 = vst.msk [vmem:[#allocation2] sm:$0xff] %vm370, %v450
      %v453 = vld [vmem:[#allocation3] sm:$0xff]
      %455 = vrot.lane.b32.xlu0 %v453, 32
      %v456 = vpop.permute.xlu0 %455
      %v458 = vsel %vm443, %v430, %v456
      %460 = vrot.lane.b32.xlu0 %v458, 96
      %v461 = vpop.permute.xlu0 %460
      %463 = vst.msk [vmem:[#allocation3] sm:$0xff] %vm370, %v461
      %p464 = scmp.lt.s32.totalorder %s363, %s362
      %s465 = scalar_select %p464, 0.0, -inf
      %v466 = vld [vmem:[#allocation6] sm:$0xff]
      %v467 = vstv %s465
      %v468 = vsel %vm443, %v436, %v467
      %470 = vrot.lane.b32.xlu0 %v468, 32
      %v471 = vpop.permute.xlu0 %470
      %v473 = vmax.f32 %v466, %v471
      %474 = vst.msk [vmem:[#allocation6] sm:$0xff] %vm370, %v473
      %s475 = ssub.s32 7, %s363
      %s476 = scalar_lea.vmem %s347, 24
      %v477 = vld [vmem:[%s476] sm:$0xff]
      %v478 = vld [vmem:[#allocation4] sm:$0xff]
      %v479 = vld [vmem:[%s5] sm:$0xff]
      %v480 = vld [vmem:[%s5 + $0x8] sm:$0xff]
      %v481 = vld [vmem:[%s5 + $0x10] sm:$0xff]
      %v482 = vld [vmem:[%s5 + $0x18] sm:$0xff]
      %v484 = vsel %vm370, %v478, 0
      %486 = vmatpush.msra.mxu0 0.0
      %487 = vmatpush.msra.mxu0 0.0
      %488 = vmatpush.msra.mxu0 0.0
      %489 = vmatpush.msra.mxu0 0.0
      %490 = vmatpush.msra.mxu0 0.0
      %491 = vmatpush.msra.mxu0 0.0
      %492 = vmatpush.msra.mxu0 0.0
      %493 = vmatpush.msra.mxu0 0.0
      %494 = vmatpush.msra.mxu0 0.0
      %495 = vmatpush.msra.mxu0 0.0
      %496 = vmatpush.msra.mxu0 0.0
      %497 = vmatpush.msra.mxu0 0.0
      %498 = vmatpush.msra.mxu0 %v482
      %499 = vmatpush.msra.mxu0 %v481
      %500 = vmatpush.msra.mxu0 %v480
      %501 = vmatpush.msra.mxu0 %v479
      %502 = vmatmul.f32.gmra.mxu0 %v484
      %v503 = vpop.f32.mrf.mxu0
      %v504 = vadd.f32 0.0, %v503
      %505 = vdwg.mxu0
      %v506 = vadd.f32 %v477, %v504
      %v507 = vxor.u32 %v506, 2147483648
      %v508 = vmul.f32 %v507, 1.442695
      %v509 = vpow.pop %v508
      %v510 = vadd.f32 %v509, 1.0
      %v511 = vrcp.pop %v510
      %v512 = vmul.f32 %v510, %v511
      %v513 = vsub.f32 1.0, %v512
      %v514 = vmul.f32 %v511, %v513
      %v515 = vadd.f32 %v511, %v514
      %vm516 = vweird.f32 %v510
      %vm517 = vweird.f32 %v511
      %vm518 = vmor %vm516, %vm517
      %v519 = vsel %vm518, %v511, %v515
      %v520 = vand.u32 2147483647, %v510
      %vm521 = vcmp.eq.f32.partialorder %v520, 8.507059e+37
      %v522 = vand.u32 %v510, 2147483648
      %v523 = vor.u32 1.1754944e-38, %v522
      %v524 = vsel %vm521, %v523, %v519
      %v525 = vmul.f32 1.0, %v524
      %v526 = vtanh.pop %v506
      %v527 = vld [vmem:[#allocation5] sm:$0xff]
      %529 = vrot.lane.b32.xlu0 %v527, 32
      %v530 = vpop.permute.xlu0 %529
      %v532 = vmul.f32 %v525, %v530
      %534 = vrot.lane.b32.xlu0 %v526, 64
      %v535 = vpop.permute.xlu0 %534
      %v537 = vmul.f32 %v525, %v535
      %539 = vrot.lane.b32.xlu0 %v537, 32
      %v540 = vpop.permute.xlu0 %539
      %v542 = vadd.f32 %v532, %v540
      %v543 = vtanh.pop %v542
      %545 = vrot.lane.b32.xlu0 %v543, 64
      %v546 = vpop.permute.xlu0 %545
      %v548 = vmul.f32 %v525, %v546
      %v549 = vstv %s475
      %vm550 = vcmp.lt.s32.totalorder %v549, %v361
      %v551 = vsel %vm550, 1, 0
      %552 = vset.pattern.permute.xlu0 0
      %553 = vperm.xlu0 %552, %v551
      %v554 = vpop.permute.xlu0 %553
      %vm555 = vcmp.eq.s32.totalorder %v554, 1
      %556 = vrot.lane.b32.xlu0 %v478, 96
      %v557 = vpop.permute.xlu0 %556
      %v559 = vsel %vm555, %v548, %v557
      %561 = vrot.lane.b32.xlu0 %v559, 32
      %v562 = vpop.permute.xlu0 %561
      %564 = vst.msk [vmem:[#allocation4] sm:$0xff] %vm370, %v562
      %v565 = vld [vmem:[#allocation5] sm:$0xff]
      %567 = vrot.lane.b32.xlu0 %v565, 32
      %v568 = vpop.permute.xlu0 %567
      %v570 = vsel %vm555, %v542, %v568
      %572 = vrot.lane.b32.xlu0 %v570, 96
      %v573 = vpop.permute.xlu0 %572
      %575 = vst.msk [vmem:[#allocation5] sm:$0xff] %vm370, %v573
      %p576 = scmp.lt.s32.totalorder %s475, %s362
      %s577 = scalar_select %p576, 0.0, -inf
      %v578 = vld [vmem:[#allocation7] sm:$0xff]
      %v579 = vstv %s577
      %v580 = vsel %vm555, %v548, %v579
      %582 = vrot.lane.b32.xlu0 %v580, 32
      %v583 = vpop.permute.xlu0 %582
      %v585 = vmax.f32 %v578, %v583
      %586 = vst.msk [vmem:[#allocation7] sm:$0xff] %vm370, %v585
      %s587 = sadd.s32 %s363, 1
      %s588 = scalar_lea.vmem %s340, 8
      %v589 = vld [vmem:[%s588] sm:$0xff]
      %v590 = vld [vmem:[#allocation2] sm:$0xff]
      %v591 = vld [vmem:[%s4] sm:$0xff]
      %v592 = vld [vmem:[%s4 + $0x8] sm:$0xff]
      %v593 = vld [vmem:[%s4 + $0x10] sm:$0xff]
      %v594 = vld [vmem:[%s4 + $0x18] sm:$0xff]
      %v596 = vsel %vm370, %v590, 0
      %598 = vmatpush.msra.mxu0 0.0
      %599 = vmatpush.msra.mxu0 0.0
      %600 = vmatpush.msra.mxu0 0.0
      %601 = vmatpush.msra.mxu0 0.0
      %602 = vmatpush.msra.mxu0 0.0
      %603 = vmatpush.msra.mxu0 0.0
      %604 = vmatpush.msra.mxu0 0.0
      %605 = vmatpush.msra.mxu0 0.0
      %606 = vmatpush.msra.mxu0 0.0
      %607 = vmatpush.msra.mxu0 0.0
      %608 = vmatpush.msra.mxu0 0.0
      %609 = vmatpush.msra.mxu0 0.0
      %610 = vmatpush.msra.mxu0 %v594
      %611 = vmatpush.msra.mxu0 %v593
      %612 = vmatpush.msra.mxu0 %v592
      %613 = vmatpush.msra.mxu0 %v591
      %614 = vmatmul.f32.gmra.mxu0 %v596
      %v615 = vpop.f32.mrf.mxu0
      %v616 = vadd.f32 0.0, %v615
      %617 = vdwg.mxu0
      %v618 = vadd.f32 %v589, %v616
      %v619 = vxor.u32 %v618, 2147483648
      %v620 = vmul.f32 %v619, 1.442695
      %v621 = vpow.pop %v620
      %v622 = vadd.f32 %v621, 1.0
      %v623 = vrcp.pop %v622
      %v624 = vmul.f32 %v622, %v623
      %v625 = vsub.f32 1.0, %v624
      %v626 = vmul.f32 %v623, %v625
      %v627 = vadd.f32 %v623, %v626
      %vm628 = vweird.f32 %v622
      %vm629 = vweird.f32 %v623
      %vm630 = vmor %vm628, %vm629
      %v631 = vsel %vm630, %v623, %v627
      %v632 = vand.u32 2147483647, %v622
      %vm633 = vcmp.eq.f32.partialorder %v632, 8.507059e+37
      %v634 = vand.u32 %v622, 2147483648
      %v635 = vor.u32 1.1754944e-38, %v634
      %v636 = vsel %vm633, %v635, %v631
      %v637 = vmul.f32 1.0, %v636
      %v638 = vtanh.pop %v618
      %v639 = vld [vmem:[#allocation3] sm:$0xff]
      %641 = vrot.lane.b32.xlu0 %v639, 32
      %v642 = vpop.permute.xlu0 %641
      %v644 = vmul.f32 %v637, %v642
      %646 = vrot.lane.b32.xlu0 %v638, 64
      %v647 = vpop.permute.xlu0 %646
      %v649 = vmul.f32 %v637, %v647
      %651 = vrot.lane.b32.xlu0 %v649, 32
      %v652 = vpop.permute.xlu0 %651
      %v654 = vadd.f32 %v644, %v652
      %v655 = vtanh.pop %v654
      %657 = vrot.lane.b32.xlu0 %v655, 64
      %v658 = vpop.permute.xlu0 %657
      %v660 = vmul.f32 %v637, %v658
      %v661 = vstv %s587
      %vm662 = vcmp.lt.s32.totalorder %v661, %v361
      %v663 = vsel %vm662, 1, 0
      %664 = vset.pattern.permute.xlu0 0
      %665 = vperm.xlu0 %664, %v663
      %v666 = vpop.permute.xlu0 %665
      %vm667 = vcmp.eq.s32.totalorder %v666, 1
      %668 = vrot.lane.b32.xlu0 %v590, 96
      %v669 = vpop.permute.xlu0 %668
      %v671 = vsel %vm667, %v660, %v669
      %673 = vrot.lane.b32.xlu0 %v671, 32
      %v674 = vpop.permute.xlu0 %673
      %676 = vst.msk [vmem:[#allocation2] sm:$0xff] %vm370, %v674
      %v677 = vld [vmem:[#allocation3] sm:$0xff]
      %679 = vrot.lane.b32.xlu0 %v677, 32
      %v680 = vpop.permute.xlu0 %679
      %v682 = vsel %vm667, %v654, %v680
      %684 = vrot.lane.b32.xlu0 %v682, 96
      %v685 = vpop.permute.xlu0 %684
      %687 = vst.msk [vmem:[#allocation3] sm:$0xff] %vm370, %v685
      %p688 = scmp.lt.s32.totalorder %s587, %s362
      %s689 = scalar_select %p688, 0.0, -inf
      %v690 = vld [vmem:[#allocation6] sm:$0xff]
      %v691 = vstv %s689
      %v692 = vsel %vm667, %v660, %v691
      %694 = vrot.lane.b32.xlu0 %v692, 32
      %v695 = vpop.permute.xlu0 %694
      %v697 = vmax.f32 %v690, %v695
      %698 = vst.msk [vmem:[#allocation6] sm:$0xff] %vm370, %v697
      %s699 = ssub.s32 6, %s363
      %s700 = scalar_lea.vmem %s347, 16
      %v701 = vld [vmem:[%s700] sm:$0xff]
      %v702 = vld [vmem:[#allocation4] sm:$0xff]
      %v703 = vld [vmem:[%s5] sm:$0xff]
      %v704 = vld [vmem:[%s5 + $0x8] sm:$0xff]
      %v705 = vld [vmem:[%s5 + $0x10] sm:$0xff]
      %v706 = vld [vmem:[%s5 + $0x18] sm:$0xff]
      %v708 = vsel %vm370, %v702, 0
      %710 = vmatpush.msra.mxu0 0.0
      %711 = vmatpush.msra.mxu0 0.0
      %712 = vmatpush.msra.mxu0 0.0
      %713 = vmatpush.msra.mxu0 0.0
      %714 = vmatpush.msra.mxu0 0.0
      %715 = vmatpush.msra.mxu0 0.0
      %716 = vmatpush.msra.mxu0 0.0
      %717 = vmatpush.msra.mxu0 0.0
      %718 = vmatpush.msra.mxu0 0.0
      %719 = vmatpush.msra.mxu0 0.0
      %720 = vmatpush.msra.mxu0 0.0
      %721 = vmatpush.msra.mxu0 0.0
      %722 = vmatpush.msra.mxu0 %v706
      %723 = vmatpush.msra.mxu0 %v705
      %724 = vmatpush.msra.mxu0 %v704
      %725 = vmatpush.msra.mxu0 %v703
      %726 = vmatmul.f32.gmra.mxu0 %v708
      %v727 = vpop.f32.mrf.mxu0
      %v728 = vadd.f32 0.0, %v727
      %729 = vdwg.mxu0
      %v730 = vadd.f32 %v701, %v728
      %v731 = vxor.u32 %v730, 2147483648
      %v732 = vmul.f32 %v731, 1.442695
      %v733 = vpow.pop %v732
      %v734 = vadd.f32 %v733, 1.0
      %v735 = vrcp.pop %v734
      %v736 = vmul.f32 %v734, %v735
      %v737 = vsub.f32 1.0, %v736
      %v738 = vmul.f32 %v735, %v737
      %v739 = vadd.f32 %v735, %v738
      %vm740 = vweird.f32 %v734
      %vm741 = vweird.f32 %v735
      %vm742 = vmor %vm740, %vm741
      %v743 = vsel %vm742, %v735, %v739
      %v744 = vand.u32 2147483647, %v734
      %vm745 = vcmp.eq.f32.partialorder %v744, 8.507059e+37
      %v746 = vand.u32 %v734, 2147483648
      %v747 = vor.u32 1.1754944e-38, %v746
      %v748 = vsel %vm745, %v747, %v743
      %v749 = vmul.f32 1.0, %v748
      %v750 = vtanh.pop %v730
      %v751 = vld [vmem:[#allocation5] sm:$0xff]
      %753 = vrot.lane.b32.xlu0 %v751, 32
      %v754 = vpop.permute.xlu0 %753
      %v756 = vmul.f32 %v749, %v754
      %758 = vrot.lane.b32.xlu0 %v750, 64
      %v759 = vpop.permute.xlu0 %758
      %v761 = vmul.f32 %v749, %v759
      %763 = vrot.lane.b32.xlu0 %v761, 32
      %v764 = vpop.permute.xlu0 %763
      %v766 = vadd.f32 %v756, %v764
      %v767 = vtanh.pop %v766
      %769 = vrot.lane.b32.xlu0 %v767, 64
      %v770 = vpop.permute.xlu0 %769
      %v772 = vmul.f32 %v749, %v770
      %v773 = vstv %s699
      %vm774 = vcmp.lt.s32.totalorder %v773, %v361
      %v775 = vsel %vm774, 1, 0
      %776 = vset.pattern.permute.xlu0 0
      %777 = vperm.xlu0 %776, %v775
      %v778 = vpop.permute.xlu0 %777
      %vm779 = vcmp.eq.s32.totalorder %v778, 1
      %780 = vrot.lane.b32.xlu0 %v702, 96
      %v781 = vpop.permute.xlu0 %780
      %v783 = vsel %vm779, %v772, %v781
      %785 = vrot.lane.b32.xlu0 %v783, 32
      %v786 = vpop.permute.xlu0 %785
      %788 = vst.msk [vmem:[#allocation4] sm:$0xff] %vm370, %v786
      %v789 = vld [vmem:[#allocation5] sm:$0xff]
      %791 = vrot.lane.b32.xlu0 %v789, 32
      %v792 = vpop.permute.xlu0 %791
      %v794 = vsel %vm779, %v766, %v792
      %796 = vrot.lane.b32.xlu0 %v794, 96
      %v797 = vpop.permute.xlu0 %796
      %799 = vst.msk [vmem:[#allocation5] sm:$0xff] %vm370, %v797
      %p800 = scmp.lt.s32.totalorder %s699, %s362
      %s801 = scalar_select %p800, 0.0, -inf
      %v802 = vld [vmem:[#allocation7] sm:$0xff]
      %v803 = vstv %s801
      %v804 = vsel %vm779, %v772, %v803
      %806 = vrot.lane.b32.xlu0 %v804, 32
      %v807 = vpop.permute.xlu0 %806
      %v809 = vmax.f32 %v802, %v807
      %810 = vst.msk [vmem:[#allocation7] sm:$0xff] %vm370, %v809
      %s811 = sadd.s32 %s363, 2
      %s812 = scalar_lea.vmem %s340, 16
      %v813 = vld [vmem:[%s812] sm:$0xff]
      %v814 = vld [vmem:[#allocation2] sm:$0xff]
      %v815 = vld [vmem:[%s4] sm:$0xff]
      %v816 = vld [vmem:[%s4 + $0x8] sm:$0xff]
      %v817 = vld [vmem:[%s4 + $0x10] sm:$0xff]
      %v818 = vld [vmem:[%s4 + $0x18] sm:$0xff]
      %v820 = vsel %vm370, %v814, 0
      %822 = vmatpush.msra.mxu0 0.0
      %823 = vmatpush.msra.mxu0 0.0
      %824 = vmatpush.msra.mxu0 0.0
      %825 = vmatpush.msra.mxu0 0.0
      %826 = vmatpush.msra.mxu0 0.0
      %827 = vmatpush.msra.mxu0 0.0
      %828 = vmatpush.msra.mxu0 0.0
      %829 = vmatpush.msra.mxu0 0.0
      %830 = vmatpush.msra.mxu0 0.0
      %831 = vmatpush.msra.mxu0 0.0
      %832 = vmatpush.msra.mxu0 0.0
      %833 = vmatpush.msra.mxu0 0.0
      %834 = vmatpush.msra.mxu0 %v818
      %835 = vmatpush.msra.mxu0 %v817
      %836 = vmatpush.msra.mxu0 %v816
      %837 = vmatpush.msra.mxu0 %v815
      %838 = vmatmul.f32.gmra.mxu0 %v820
      %v839 = vpop.f32.mrf.mxu0
      %v840 = vadd.f32 0.0, %v839
      %841 = vdwg.mxu0
      %v842 = vadd.f32 %v813, %v840
      %v843 = vxor.u32 %v842, 2147483648
      %v844 = vmul.f32 %v843, 1.442695
      %v845 = vpow.pop %v844
      %v846 = vadd.f32 %v845, 1.0
      %v847 = vrcp.pop %v846
      %v848 = vmul.f32 %v846, %v847
      %v849 = vsub.f32 1.0, %v848
      %v850 = vmul.f32 %v847, %v849
      %v851 = vadd.f32 %v847, %v850
      %vm852 = vweird.f32 %v846
      %vm853 = vweird.f32 %v847
      %vm854 = vmor %vm852, %vm853
      %v855 = vsel %vm854, %v847, %v851
      %v856 = vand.u32 2147483647, %v846
      %vm857 = vcmp.eq.f32.partialorder %v856, 8.507059e+37
      %v858 = vand.u32 %v846, 2147483648
      %v859 = vor.u32 1.1754944e-38, %v858
      %v860 = vsel %vm857, %v859, %v855
      %v861 = vmul.f32 1.0, %v860
      %v862 = vtanh.pop %v842
      %v863 = vld [vmem:[#allocation3] sm:$0xff]
      %865 = vrot.lane.b32.xlu0 %v863, 32
      %v866 = vpop.permute.xlu0 %865
      %v868 = vmul.f32 %v861, %v866
      %870 = vrot.lane.b32.xlu0 %v862, 64
      %v871 = vpop.permute.xlu0 %870
      %v873 = vmul.f32 %v861, %v871
      %875 = vrot.lane.b32.xlu0 %v873, 32
      %v876 = vpop.permute.xlu0 %875
      %v878 = vadd.f32 %v868, %v876
      %v879 = vtanh.pop %v878
      %881 = vrot.lane.b32.xlu0 %v879, 64
      %v882 = vpop.permute.xlu0 %881
      %v884 = vmul.f32 %v861, %v882
      %v885 = vstv %s811
      %vm886 = vcmp.lt.s32.totalorder %v885, %v361
      %v887 = vsel %vm886, 1, 0
      %888 = vset.pattern.permute.xlu0 0
      %889 = vperm.xlu0 %888, %v887
      %v890 = vpop.permute.xlu0 %889
      %vm891 = vcmp.eq.s32.totalorder %v890, 1
      %892 = vrot.lane.b32.xlu0 %v814, 96
      %v893 = vpop.permute.xlu0 %892
      %v895 = vsel %vm891, %v884, %v893
      %897 = vrot.lane.b32.xlu0 %v895, 32
      %v898 = vpop.permute.xlu0 %897
      %900 = vst.msk [vmem:[#allocation2] sm:$0xff] %vm370, %v898
      %v901 = vld [vmem:[#allocation3] sm:$0xff]
      %903 = vrot.lane.b32.xlu0 %v901, 32
      %v904 = vpop.permute.xlu0 %903
      %v906 = vsel %vm891, %v878, %v904
      %908 = vrot.lane.b32.xlu0 %v906, 96
      %v909 = vpop.permute.xlu0 %908
      %911 = vst.msk [vmem:[#allocation3] sm:$0xff] %vm370, %v909
      %p912 = scmp.lt.s32.totalorder %s811, %s362
      %s913 = scalar_select %p912, 0.0, -inf
      %v914 = vld [vmem:[#allocation6] sm:$0xff]
      %v915 = vstv %s913
      %v916 = vsel %vm891, %v884, %v915
      %918 = vrot.lane.b32.xlu0 %v916, 32
      %v919 = vpop.permute.xlu0 %918
      %v921 = vmax.f32 %v914, %v919
      %922 = vst.msk [vmem:[#allocation6] sm:$0xff] %vm370, %v921
      %s923 = ssub.s32 5, %s363
      %s924 = scalar_lea.vmem %s347, 8
      %v925 = vld [vmem:[%s924] sm:$0xff]
      %v926 = vld [vmem:[#allocation4] sm:$0xff]
      %v927 = vld [vmem:[%s5] sm:$0xff]
      %v928 = vld [vmem:[%s5 + $0x8] sm:$0xff]
      %v929 = vld [vmem:[%s5 + $0x10] sm:$0xff]
      %v930 = vld [vmem:[%s5 + $0x18] sm:$0xff]
      %v932 = vsel %vm370, %v926, 0
      %934 = vmatpush.msra.mxu0 0.0
      %935 = vmatpush.msra.mxu0 0.0
      %936 = vmatpush.msra.mxu0 0.0
      %937 = vmatpush.msra.mxu0 0.0
      %938 = vmatpush.msra.mxu0 0.0
      %939 = vmatpush.msra.mxu0 0.0
      %940 = vmatpush.msra.mxu0 0.0
      %941 = vmatpush.msra.mxu0 0.0
      %942 = vmatpush.msra.mxu0 0.0
      %943 = vmatpush.msra.mxu0 0.0
      %944 = vmatpush.msra.mxu0 0.0
      %945 = vmatpush.msra.mxu0 0.0
      %946 = vmatpush.msra.mxu0 %v930
      %947 = vmatpush.msra.mxu0 %v929
      %948 = vmatpush.msra.mxu0 %v928
      %949 = vmatpush.msra.mxu0 %v927
      %950 = vmatmul.f32.gmra.mxu0 %v932
      %v951 = vpop.f32.mrf.mxu0
      %v952 = vadd.f32 0.0, %v951
      %953 = vdwg.mxu0
      %v954 = vadd.f32 %v925, %v952
      %v955 = vxor.u32 %v954, 2147483648
      %v956 = vmul.f32 %v955, 1.442695
      %v957 = vpow.pop %v956
      %v958 = vadd.f32 %v957, 1.0
      %v959 = vrcp.pop %v958
      %v960 = vmul.f32 %v958, %v959
      %v961 = vsub.f32 1.0, %v960
      %v962 = vmul.f32 %v959, %v961
      %v963 = vadd.f32 %v959, %v962
      %vm964 = vweird.f32 %v958
      %vm965 = vweird.f32 %v959
      %vm966 = vmor %vm964, %vm965
      %v967 = vsel %vm966, %v959, %v963
      %v968 = vand.u32 2147483647, %v958
      %vm969 = vcmp.eq.f32.partialorder %v968, 8.507059e+37
      %v970 = vand.u32 %v958, 2147483648
      %v971 = vor.u32 1.1754944e-38, %v970
      %v972 = vsel %vm969, %v971, %v967
      %v973 = vmul.f32 1.0, %v972
      %v974 = vtanh.pop %v954
      %v975 = vld [vmem:[#allocation5] sm:$0xff]
      %977 = vrot.lane.b32.xlu0 %v975, 32
      %v978 = vpop.permute.xlu0 %977
      %v980 = vmul.f32 %v973, %v978
      %982 = vrot.lane.b32.xlu0 %v974, 64
      %v983 = vpop.permute.xlu0 %982
      %v985 = vmul.f32 %v973, %v983
      %987 = vrot.lane.b32.xlu0 %v985, 32
      %v988 = vpop.permute.xlu0 %987
      %v990 = vadd.f32 %v980, %v988
      %v991 = vtanh.pop %v990
      %993 = vrot.lane.b32.xlu0 %v991, 64
      %v994 = vpop.permute.xlu0 %993
      %v996 = vmul.f32 %v973, %v994
      %v997 = vstv %s923
      %vm998 = vcmp.lt.s32.totalorder %v997, %v361
      %v999 = vsel %vm998, 1, 0
      %1000 = vset.pattern.permute.xlu0 0
      %1001 = vperm.xlu0 %1000, %v999
      %v1002 = vpop.permute.xlu0 %1001
      %vm1003 = vcmp.eq.s32.totalorder %v1002, 1
      %1004 = vrot.lane.b32.xlu0 %v926, 96
      %v1005 = vpop.permute.xlu0 %1004
      %v1007 = vsel %vm1003, %v996, %v1005
      %1009 = vrot.lane.b32.xlu0 %v1007, 32
      %v1010 = vpop.permute.xlu0 %1009
      %1012 = vst.msk [vmem:[#allocation4] sm:$0xff] %vm370, %v1010
      %v1013 = vld [vmem:[#allocation5] sm:$0xff]
      %1015 = vrot.lane.b32.xlu0 %v1013, 32
      %v1016 = vpop.permute.xlu0 %1015
      %v1018 = vsel %vm1003, %v990, %v1016
      %1020 = vrot.lane.b32.xlu0 %v1018, 96
      %v1021 = vpop.permute.xlu0 %1020
      %1023 = vst.msk [vmem:[#allocation5] sm:$0xff] %vm370, %v1021
      %p1024 = scmp.lt.s32.totalorder %s923, %s362
      %s1025 = scalar_select %p1024, 0.0, -inf
      %v1026 = vld [vmem:[#allocation7] sm:$0xff]
      %v1027 = vstv %s1025
      %v1028 = vsel %vm1003, %v996, %v1027
      %1030 = vrot.lane.b32.xlu0 %v1028, 32
      %v1031 = vpop.permute.xlu0 %1030
      %v1033 = vmax.f32 %v1026, %v1031
      %1034 = vst.msk [vmem:[#allocation7] sm:$0xff] %vm370, %v1033
      %s1035 = sadd.s32 %s363, 3
      %s1036 = scalar_lea.vmem %s340, 24
      %v1037 = vld [vmem:[%s1036] sm:$0xff]
      %v1038 = vld [vmem:[#allocation2] sm:$0xff]
      %v1039 = vld [vmem:[%s4] sm:$0xff]
      %v1040 = vld [vmem:[%s4 + $0x8] sm:$0xff]
      %v1041 = vld [vmem:[%s4 + $0x10] sm:$0xff]
      %v1042 = vld [vmem:[%s4 + $0x18] sm:$0xff]
      %v1044 = vsel %vm370, %v1038, 0
      %1046 = vmatpush.msra.mxu0 0.0
      %1047 = vmatpush.msra.mxu0 0.0
      %1048 = vmatpush.msra.mxu0 0.0
      %1049 = vmatpush.msra.mxu0 0.0
      %1050 = vmatpush.msra.mxu0 0.0
      %1051 = vmatpush.msra.mxu0 0.0
      %1052 = vmatpush.msra.mxu0 0.0
      %1053 = vmatpush.msra.mxu0 0.0
      %1054 = vmatpush.msra.mxu0 0.0
      %1055 = vmatpush.msra.mxu0 0.0
      %1056 = vmatpush.msra.mxu0 0.0
      %1057 = vmatpush.msra.mxu0 0.0
      %1058 = vmatpush.msra.mxu0 %v1042
      %1059 = vmatpush.msra.mxu0 %v1041
      %1060 = vmatpush.msra.mxu0 %v1040
      %1061 = vmatpush.msra.mxu0 %v1039
      %1062 = vmatmul.f32.gmra.mxu0 %v1044
      %v1063 = vpop.f32.mrf.mxu0
      %v1064 = vadd.f32 0.0, %v1063
      %1065 = vdwg.mxu0
      %v1066 = vadd.f32 %v1037, %v1064
      %v1067 = vxor.u32 %v1066, 2147483648
      %v1068 = vmul.f32 %v1067, 1.442695
      %v1069 = vpow.pop %v1068
      %v1070 = vadd.f32 %v1069, 1.0
      %v1071 = vrcp.pop %v1070
      %v1072 = vmul.f32 %v1070, %v1071
      %v1073 = vsub.f32 1.0, %v1072
      %v1074 = vmul.f32 %v1071, %v1073
      %v1075 = vadd.f32 %v1071, %v1074
      %vm1076 = vweird.f32 %v1070
      %vm1077 = vweird.f32 %v1071
      %vm1078 = vmor %vm1076, %vm1077
      %v1079 = vsel %vm1078, %v1071, %v1075
      %v1080 = vand.u32 2147483647, %v1070
      %vm1081 = vcmp.eq.f32.partialorder %v1080, 8.507059e+37
      %v1082 = vand.u32 %v1070, 2147483648
      %v1083 = vor.u32 1.1754944e-38, %v1082
      %v1084 = vsel %vm1081, %v1083, %v1079
      %v1085 = vmul.f32 1.0, %v1084
      %v1086 = vtanh.pop %v1066
      %v1087 = vld [vmem:[#allocation3] sm:$0xff]
      %1089 = vrot.lane.b32.xlu0 %v1087, 32
      %v1090 = vpop.permute.xlu0 %1089
      %v1092 = vmul.f32 %v1085, %v1090
      %1094 = vrot.lane.b32.xlu0 %v1086, 64
      %v1095 = vpop.permute.xlu0 %1094
      %v1097 = vmul.f32 %v1085, %v1095
      %1099 = vrot.lane.b32.xlu0 %v1097, 32
      %v1100 = vpop.permute.xlu0 %1099
      %v1102 = vadd.f32 %v1092, %v1100
      %v1103 = vtanh.pop %v1102
      %1105 = vrot.lane.b32.xlu0 %v1103, 64
      %v1106 = vpop.permute.xlu0 %1105
      %v1108 = vmul.f32 %v1085, %v1106
      %v1109 = vstv %s1035
      %vm1110 = vcmp.lt.s32.totalorder %v1109, %v361
      %v1111 = vsel %vm1110, 1, 0
      %1112 = vset.pattern.permute.xlu0 0
      %1113 = vperm.xlu0 %1112, %v1111
      %v1114 = vpop.permute.xlu0 %1113
      %vm1115 = vcmp.eq.s32.totalorder %v1114, 1
      %1116 = vrot.lane.b32.xlu0 %v1038, 96
      %v1117 = vpop.permute.xlu0 %1116
      %v1119 = vsel %vm1115, %v1108, %v1117
      %1121 = vrot.lane.b32.xlu0 %v1119, 32
      %v1122 = vpop.permute.xlu0 %1121
      %1124 = vst.msk [vmem:[#allocation2] sm:$0xff] %vm370, %v1122
      %v1125 = vld [vmem:[#allocation3] sm:$0xff]
      %1127 = vrot.lane.b32.xlu0 %v1125, 32
      %v1128 = vpop.permute.xlu0 %1127
      %v1130 = vsel %vm1115, %v1102, %v1128
      %1132 = vrot.lane.b32.xlu0 %v1130, 96
      %v1133 = vpop.permute.xlu0 %1132
      %1135 = vst.msk [vmem:[#allocation3] sm:$0xff] %vm370, %v1133
      %p1136 = scmp.lt.s32.totalorder %s1035, %s362
      %s1137 = scalar_select %p1136, 0.0, -inf
      %v1138 = vld [vmem:[#allocation6] sm:$0xff]
      %v1139 = vstv %s1137
      %v1140 = vsel %vm1115, %v1108, %v1139
      %1142 = vrot.lane.b32.xlu0 %v1140, 32
      %v1143 = vpop.permute.xlu0 %1142
      %v1145 = vmax.f32 %v1138, %v1143
      %1146 = vst.msk [vmem:[#allocation6] sm:$0xff] %vm370, %v1145
      %s1147 = ssub.s32 4, %s363
      %v1148 = vld [vmem:[%s347] sm:$0xff]
      %v1149 = vld [vmem:[#allocation4] sm:$0xff]
      %v1150 = vld [vmem:[%s5] sm:$0xff]
      %v1151 = vld [vmem:[%s5 + $0x8] sm:$0xff]
      %v1152 = vld [vmem:[%s5 + $0x10] sm:$0xff]
      %v1153 = vld [vmem:[%s5 + $0x18] sm:$0xff]
      %v1155 = vsel %vm370, %v1149, 0
      %1157 = vmatpush.msra.mxu0 0.0
      %1158 = vmatpush.msra.mxu0 0.0
      %1159 = vmatpush.msra.mxu0 0.0
      %1160 = vmatpush.msra.mxu0 0.0
      %1161 = vmatpush.msra.mxu0 0.0
      %1162 = vmatpush.msra.mxu0 0.0
      %1163 = vmatpush.msra.mxu0 0.0
      %1164 = vmatpush.msra.mxu0 0.0
      %1165 = vmatpush.msra.mxu0 0.0
      %1166 = vmatpush.msra.mxu0 0.0
      %1167 = vmatpush.msra.mxu0 0.0
      %1168 = vmatpush.msra.mxu0 0.0
      %1169 = vmatpush.msra.mxu0 %v1153
      %1170 = vmatpush.msra.mxu0 %v1152
      %1171 = vmatpush.msra.mxu0 %v1151
      %1172 = vmatpush.msra.mxu0 %v1150
      %1173 = vmatmul.f32.gmra.mxu0 %v1155
      %v1174 = vpop.f32.mrf.mxu0
      %v1175 = vadd.f32 0.0, %v1174
      %1176 = vdwg.mxu0
      %v1177 = vadd.f32 %v1148, %v1175
      %v1178 = vxor.u32 %v1177, 2147483648
      %v1179 = vmul.f32 %v1178, 1.442695
      %v1180 = vpow.pop %v1179
      %v1181 = vadd.f32 %v1180, 1.0
      %v1182 = vrcp.pop %v1181
      %v1183 = vmul.f32 %v1181, %v1182
      %v1184 = vsub.f32 1.0, %v1183
      %v1185 = vmul.f32 %v1182, %v1184
      %v1186 = vadd.f32 %v1182, %v1185
      %vm1187 = vweird.f32 %v1181
      %vm1188 = vweird.f32 %v1182
      %vm1189 = vmor %vm1187, %vm1188
      %v1190 = vsel %vm1189, %v1182, %v1186
      %v1191 = vand.u32 2147483647, %v1181
      %vm1192 = vcmp.eq.f32.partialorder %v1191, 8.507059e+37
      %v1193 = vand.u32 %v1181, 2147483648
      %v1194 = vor.u32 1.1754944e-38, %v1193
      %v1195 = vsel %vm1192, %v1194, %v1190
      %v1196 = vmul.f32 1.0, %v1195
      %v1197 = vtanh.pop %v1177
      %v1198 = vld [vmem:[#allocation5] sm:$0xff]
      %1200 = vrot.lane.b32.xlu0 %v1198, 32
      %v1201 = vpop.permute.xlu0 %1200
      %v1203 = vmul.f32 %v1196, %v1201
      %1205 = vrot.lane.b32.xlu0 %v1197, 64
      %v1206 = vpop.permute.xlu0 %1205
      %v1208 = vmul.f32 %v1196, %v1206
      %1210 = vrot.lane.b32.xlu0 %v1208, 32
      %v1211 = vpop.permute.xlu0 %1210
      %v1213 = vadd.f32 %v1203, %v1211
      %v1214 = vtanh.pop %v1213
      %1216 = vrot.lane.b32.xlu0 %v1214, 64
      %v1217 = vpop.permute.xlu0 %1216
      %v1219 = vmul.f32 %v1196, %v1217
      %v1220 = vstv %s1147
      %vm1221 = vcmp.lt.s32.totalorder %v1220, %v361
      %v1222 = vsel %vm1221, 1, 0
      %1223 = vset.pattern.permute.xlu0 0
      %1224 = vperm.xlu0 %1223, %v1222
      %v1225 = vpop.permute.xlu0 %1224
      %vm1226 = vcmp.eq.s32.totalorder %v1225, 1
      %1227 = vrot.lane.b32.xlu0 %v1149, 96
      %v1228 = vpop.permute.xlu0 %1227
      %v1230 = vsel %vm1226, %v1219, %v1228
      %1232 = vrot.lane.b32.xlu0 %v1230, 32
      %v1233 = vpop.permute.xlu0 %1232
      %1235 = vst.msk [vmem:[#allocation4] sm:$0xff] %vm370, %v1233
      %v1236 = vld [vmem:[#allocation5] sm:$0xff]
      %1238 = vrot.lane.b32.xlu0 %v1236, 32
      %v1239 = vpop.permute.xlu0 %1238
      %v1241 = vsel %vm1226, %v1213, %v1239
      %1243 = vrot.lane.b32.xlu0 %v1241, 96
      %v1244 = vpop.permute.xlu0 %1243
      %1246 = vst.msk [vmem:[#allocation5] sm:$0xff] %vm370, %v1244
      %p1247 = scmp.lt.s32.totalorder %s1147, %s362
      %s1248 = scalar_select %p1247, 0.0, -inf
      %v1249 = vld [vmem:[#allocation7] sm:$0xff]
      %v1250 = vstv %s1248
      %v1251 = vsel %vm1226, %v1219, %v1250
      %1253 = vrot.lane.b32.xlu0 %v1251, 32
      %v1254 = vpop.permute.xlu0 %1253
      %v1256 = vmax.f32 %v1249, %v1254
      %1257 = vst.msk [vmem:[#allocation7] sm:$0xff] %vm370, %v1256
      %p1258 = scmp.eq.s32.totalorder %s21, 1
      // Predicated region
      $region61: #{lstm_model_forward.1} parent=55 // pred_check
        %p1259 = pneg %p1258
      $region62: #{lstm_model_forward.1} parent=55 // pred_check_branch
        %1261 = sbr.rel (%p1259) target = $region64
      $region63: #{lstm_model_forward.1} parent=55 // pred_region
        %v1262 = vld [vmem:[#allocation6] sm:$0xff]
        %v1263 = vld [vmem:[%s6] sm:$0xff]
        %v1264 = vld [vmem:[%s6 + $0x8] sm:$0xff]
        %v1265 = vld [vmem:[%s6 + $0x10] sm:$0xff]
        %v1266 = vld [vmem:[%s6 + $0x18] sm:$0xff]
        %v1267 = vld [vmem:[#allocation7] sm:$0xff]
        %v1268 = vld [vmem:[%s7] sm:$0xff]
        %v1269 = vld [vmem:[%s7 + $0x8] sm:$0xff]
        %v1270 = vld [vmem:[%s7 + $0x10] sm:$0xff]
        %v1271 = vld [vmem:[%s7 + $0x18] sm:$0xff]
        %v1273 = vsel %vm370, %v1267, 0
        %1275 = vmatpush.msra.mxu0 0.0
        %1276 = vmatpush.msra.mxu0 0.0
        %1277 = vmatpush.msra.mxu0 0.0
        %1278 = vmatpush.msra.mxu0 0.0
        %1279 = vmatpush.msra.mxu0 0.0
        %1280 = vmatpush.msra.mxu0 0.0
        %1281 = vmatpush.msra.mxu0 0.0
        %1282 = vmatpush.msra.mxu0 0.0
        %1283 = vmatpush.msra.mxu0 0.0
        %1284 = vmatpush.msra.mxu0 0.0
        %1285 = vmatpush.msra.mxu0 0.0
        %1286 = vmatpush.msra.mxu0 0.0
        %1287 = vmatpush.msra.mxu0 %v1271
        %1288 = vmatpush.msra.mxu0 %v1270
        %1289 = vmatpush.msra.mxu0 %v1269
        %1290 = vmatpush.msra.mxu0 %v1268
        %1291 = vmatmul.f32.gmra.mxu0 %v1273
        %v1292 = vpop.f32.mrf.mxu0
        %v1293 = vadd.f32 0.0, %v1292
        %1294 = vdwg.mxu0
        %v1296 = vsel %vm370, %v1262, 0
        %1298 = vmatpush.msra.mxu0 0.0
        %1299 = vmatpush.msra.mxu0 0.0
        %1300 = vmatpush.msra.mxu0 0.0
        %1301 = vmatpush.msra.mxu0 0.0
        %1302 = vmatpush.msra.mxu0 0.0
        %1303 = vmatpush.msra.mxu0 0.0
        %1304 = vmatpush.msra.mxu0 0.0
        %1305 = vmatpush.msra.mxu0 0.0
        %1306 = vmatpush.msra.mxu0 0.0
        %1307 = vmatpush.msra.mxu0 0.0
        %1308 = vmatpush.msra.mxu0 0.0
        %1309 = vmatpush.msra.mxu0 0.0
        %1310 = vmatpush.msra.mxu0 %v1266
        %1311 = vmatpush.msra.mxu0 %v1265
        %1312 = vmatpush.msra.mxu0 %v1264
        %1313 = vmatpush.msra.mxu0 %v1263
        %1314 = vmatmul.f32.gmra.mxu0 %v1296
        %v1315 = vpop.f32.mrf.mxu0
        %v1316 = vadd.f32 %v1293, %v1315
        %1317 = vdwg.mxu0
        %v1318 = vld [vmem:[%s8] sm:$0x1]
        %v1320 = vperm.slane %v1318, 0
        %v1322 = vadd.f32 %v1316, %v1320
        %vm1323 = vcmask 39936
        %1324 = vst.msk [vmem:[%s9] sm:$0xff] %vm1323, %v1322
      $region64: #{lstm_model_forward.1} parent=55 // pred_fallthru
        _
      // Predicated region
      $region65: #{lstm_model_forward.1} parent=55 // pred_check
        %p1325 = pneg %p235
      $region66: #{lstm_model_forward.1} parent=55 // pred_check_branch
        %1327 = sbr.rel (%p1325) target = $region68
      $region67: #{lstm_model_forward.1} parent=55 // pred_region
        _
      $region68: #{lstm_model_forward.1} parent=55 // pred_fallthru
        _
      // Predicated region
      $region69: #{lstm_model_forward.1} parent=55 // pred_check
        %p1328 = pneg %p235
      $region70: #{lstm_model_forward.1} parent=55 // pred_check_branch
        %1330 = sbr.rel (%p1328) target = $region72
      $region71: #{lstm_model_forward.1} parent=55 // pred_region
        _
      $region72: #{lstm_model_forward.1} parent=55 // pred_fallthru
        _
    $region56: #{lstm_model_forward.1} parent=5 // pred_fallthru
      _
    %p1331 = scmp.le.s32.totalorder 2, %s16
    // Predicated region
    $region73: #{lstm_model_forward.1} parent=5 // pred_check
      %p1332 = pneg %p1331
    $region74: #{lstm_model_forward.1} parent=5 // pred_check_branch
      %1334 = sbr.rel (%p1332) target = $region76
    $region75: #{lstm_model_forward.1} parent=5 // pred_region
      %s1335 = ssub.s32 %s16, 2
    $region76: #{lstm_model_forward.1} parent=5 // pred_fallthru
      _
  $region6: #{lstm_model_forward.1} parent=0 // loop_footer
    %s20 = sadd.s32 1, %s16
  $region7: #{lstm_model_forward.1} parent=0 // loop_footer_branch
    %15 = sbr.rel target = $region3
  $region8: #{lstm_model_forward.1} parent=0 // loop_exit
    _

</llo_original>
